<compile_context>
chip_gen: v5e
topology: v5e:2x2
jax: 0.10.0
libtpu: 0.0.40
codegen_flags: <defaults>
</compile_context>

<pallas_src>
import jax
import jax.numpy as jnp
from jax.experimental import pallas as pl
from jax.experimental.pallas import tpu as pltpu

# ----- true model sizes (from the PyTorch __init__) -----
INPUT_SIZE = 509
HIDDEN1 = 10
HIDDEN2 = 12
OUTPUT_SIZE = 9
NUM_NUMERICAL = INPUT_SIZE - 4 * 16 - 7 * 8 - 7 * 8      # = 333

# ----- embedding geometry -----
N_ME_SLOTS, ME_DIM, ME_ROWS = 4, 16, 214
N_AB_SLOTS, AB_DIM, AB_ROWS = 7, 8, 78
N_ST_SLOTS, ST_DIM, ST_ROWS = 7, 8, 60
N_ID_SLOTS = N_ME_SLOTS + N_AB_SLOTS + N_ST_SLOTS        # = 18

# ----- packed geometry used inside the kernel -----
ME_SLOT_PAD = 256                                        # 128-aligned, >= 214
S_SLOT_PAD = 128                                         # >= 78 / 60
K_EMB = N_ME_SLOTS * ME_SLOT_PAD + (N_AB_SLOTS + N_ST_SLOTS) * S_SLOT_PAD  # 2816
H1_LANES = 16            # hidden1 (10) + constant-one bias-carry channel (lane 10)
H2_LANES = 16            # hidden2 (12) + constant-one bias-carry channel (lane 12)
OUT_LANES = 128          # lane-dense output stores; only first 9 are real
TILE_B_MAX = 1024        # ~16 MiB VMEM/tile incl. staging scratch -> fits v5e..v7x


def _round_up(x, m):
    return ((x + m - 1) // m) * m


def _dot_t(x, w_t):
    """x:(tb,K) . w_t:(N,K) -> (tb,N); contract minor dims (Q.K^T style, MXU)."""
    return jax.lax.dot_general(x, w_t, (((1,), (1,)), ((), ())),
                               preferred_element_type=jnp.float32)


# --------------------------------------------------------------------------
# Fused kernel: one-hot staging scratch + 2 wide-K layer-1 dots + MLP tail.
# --------------------------------------------------------------------------
def _fused_kernel(xn_ref, ids_ref, w1nt_ref, wembt_ref, w2_ref, w3_ref,
                  o_ref, oh_ref):
    tb = xn_ref.shape[0]
    ids = ids_ref[...]                                    # (tb, 18) int32

    # Build all 18 one-hot blocks into ONE (tb, 2816) staging scratch.
    # Iotas built once and reused; every slot region is fully overwritten each
    # grid step (scratch persistence across steps is therefore harmless).
    iota_me = jax.lax.broadcasted_iota(jnp.int32, (tb, ME_SLOT_PAD), 1)
    iota_s = jax.lax.broadcasted_iota(jnp.int32, (tb, S_SLOT_PAD), 1)

    col = 0
    for j in range(N_ME_SLOTS):
        oh_ref[:, col:col + ME_SLOT_PAD] = jnp.where(
            iota_me == ids[:, j:j + 1], 1.0, 0.0)
        col += ME_SLOT_PAD
    for j in range(N_AB_SLOTS + N_ST_SLOTS):
        s = N_ME_SLOTS + j
        oh_ref[:, col:col + S_SLOT_PAD] = jnp.where(
            iota_s == ids[:, s:s + 1], 1.0, 0.0)
        col += S_SLOT_PAD

    # Layer 1: numerical wide-K dot + single wide-K dot over all 18 folded
    # embedding slots.  b1 (and the constant-one channel at lane 10) is folded
    # into the slot-0 rows of the packed embedding weight.
    h1 = _dot_t(xn_ref[...], w1nt_ref[...]) + _dot_t(oh_ref[...], wembt_ref[...])
    h1 = jnp.maximum(h1, 0.0)

    # Layers 2/3: biases ride on the constant-one channel (rows 10 / 12).
    h2 = jnp.maximum(jnp.dot(h1, w2_ref[...],
                             preferred_element_type=jnp.float32), 0.0)
    o_ref[...] = jnp.dot(h2, w3_ref[...], preferred_element_type=jnp.float32)


# --------------------------------------------------------------------------
# Parameter initialization (mimics PyTorch defaults; shapes are what matter).
# --------------------------------------------------------------------------
def init_params(key):
    ks = jax.random.split(key, 9)

    def lin(kw, kb, out_f, in_f):
        bound = 1.0 / jnp.sqrt(in_f)
        w = jax.random.uniform(kw, (out_f, in_f), jnp.float32, -bound, bound)
        b = jax.random.uniform(kb, (out_f,), jnp.float32, -bound, bound)
        return w, b

    params = {}
    params["move_effect_emb"] = jax.random.normal(ks[0], (ME_ROWS, ME_DIM), jnp.float32)
    params["ability_emb"] = jax.random.normal(ks[1], (AB_ROWS, AB_DIM), jnp.float32)
    params["status_emb"] = jax.random.normal(ks[2], (ST_ROWS, ST_DIM), jnp.float32)
    params["w1"], params["b1"] = lin(ks[3], ks[4], HIDDEN1, INPUT_SIZE)
    params["w2"], params["b2"] = lin(ks[5], ks[6], HIDDEN2, HIDDEN1)
    params["w3"], params["b3"] = lin(ks[7], ks[8], OUTPUT_SIZE, HIDDEN2)
    return params


# --------------------------------------------------------------------------
# One-time prep: fold embedding tables into layer 1, fold biases, transpose to
# lane-dense (N, K) layout.  Hoisted completely out of the per-call path.
# --------------------------------------------------------------------------
def prepare_packed_params(params):
    w1 = params["w1"].astype(jnp.float32)                 # (10, 509)
    b1 = params["b1"].astype(jnp.float32)                 # (10,)
    num_end = NUM_NUMERICAL
    me_end = num_end + N_ME_SLOTS * ME_DIM
    ab_end = me_end + N_AB_SLOTS * AB_DIM
    st_end = ab_end + N_ST_SLOTS * ST_DIM                 # = 509

    # Numerical block of W1, transposed & lane-dense: (16, 333).
    w1_num_t = jnp.zeros((H1_LANES, NUM_NUMERICAL), jnp.float32)
    w1_num_t = w1_num_t.at[:HIDDEN1, :].set(w1[:, :num_end])

    # Folded embedding tables: E[id] @ W1_slice == onehot(id) @ (E @ W1_slice).
    def fold(emb, w1_cols, n_slots, emb_dim, rows, rows_pad, carry_bias):
        segs = []
        for j in range(n_slots):
            w_slice = w1_cols[:, j * emb_dim:(j + 1) * emb_dim]   # (10, emb_dim)
            folded = emb.astype(jnp.float32) @ w_slice.T          # (rows, 10)
            blk = jnp.zeros((rows_pad, H1_LANES), jnp.float32)
            blk = blk.at[:rows, :HIDDEN1].set(folded)
            if carry_bias and j == 0:
                # exactly one row of slot 0 is hot per sample -> fold b1 here
                blk = blk.at[:rows, :HIDDEN1].add(b1[None, :])
                blk = blk.at[:rows, HIDDEN1].set(1.0)             # one-channel
            segs.append(blk)
        return jnp.concatenate(segs, axis=0)

    w_emb = jnp.concatenate([
        fold(params["move_effect_emb"], w1[:, num_end:me_end],
             N_ME_SLOTS, ME_DIM, ME_ROWS, ME_SLOT_PAD, True),
        fold(params["ability_emb"], w1[:, me_end:ab_end],
             N_AB_SLOTS, AB_DIM, AB_ROWS, S_SLOT_PAD, False),
        fold(params["status_emb"], w1[:, ab_end:st_end],
             N_ST_SLOTS, ST_DIM, ST_ROWS, S_SLOT_PAD, False),
    ], axis=0)                                            # (2816, 16)
    w_emb_t = w_emb.T                                     # (16, 2816), lane-dense

    # Layer 2: (16,16); row 10 carries b2 + passes the constant-one to lane 12.
    w2 = jnp.zeros((H1_LANES, H2_LANES), jnp.float32)
    w2 = w2.at[:HIDDEN1, :HIDDEN2].set(params["w2"].astype(jnp.float32).T)
    w2 = w2.at[HIDDEN1, :HIDDEN2].set(params["b2"].astype(jnp.float32))
    w2 = w2.at[HIDDEN1, HIDDEN2].set(1.0)

    # Layer 3: (16,128); row 12 carries b3.  128 lanes -> unmasked output stores.
    w3 = jnp.zeros((H2_LANES, OUT_LANES), jnp.float32)
    w3 = w3.at[:HIDDEN2, :OUTPUT_SIZE].set(params["w3"].astype(jnp.float32).T)
    w3 = w3.at[HIDDEN2, :OUTPUT_SIZE].set(params["b3"].astype(jnp.float32))

    return jax.device_put({"w1_num_t": w1_num_t, "w_emb_t": w_emb_t,
                           "w2": w2, "w3": w3})


# --------------------------------------------------------------------------
# Forward: no activation padding, one small id concat, single pallas_call.
# --------------------------------------------------------------------------
def network_forward(packed, x_numerical, move_effect_ids, ability_ids, status_ids):
    b = x_numerical.shape[0]
    xn = x_numerical.astype(jnp.float32)                       # (b, 333)
    ids = jnp.concatenate([move_effect_ids.astype(jnp.int32),
                           ability_ids.astype(jnp.int32),
                           status_ids.astype(jnp.int32)], axis=1)   # (b, 18)

    if b <= 8:
        tile_b = b                      # single block; block dims == array dims
    else:
        # >=2 grid steps so ("parallel",) can shard over both v7x TensorCores.
        tile_b = min(TILE_B_MAX, _round_up(-(-b // 2), 8))
    num_tiles = -(-b // tile_b)         # partial last block OK (rows independent)

    def bspec(width):
        return pl.BlockSpec((tile_b, width), lambda i: (i, 0))

    def wspec(shape):
        return pl.BlockSpec(shape, lambda i: (0, 0))

    out = pl.pallas_call(
        _fused_kernel,
        out_shape=jax.ShapeDtypeStruct((b, OUT_LANES), jnp.float32),
        grid=(num_tiles,),
        in_specs=[
            bspec(NUM_NUMERICAL),                       # x numerical, unpadded
            bspec(N_ID_SLOTS),                          # packed ids (b,18)
            wspec((H1_LANES, NUM_NUMERICAL)),           # W1 numerical (transposed)
            wspec((H1_LANES, K_EMB)),                   # packed folded embeddings
            wspec((H1_LANES, H2_LANES)),                # W2 (+b2 via one-channel)
            wspec((H2_LANES, OUT_LANES)),               # W3 (+b3 via one-channel)
        ],
        out_specs=pl.BlockSpec((tile_b, OUT_LANES), lambda i: (i, 0)),
        scratch_shapes=[pltpu.VMEM((tile_b, K_EMB), jnp.float32)],   # one-hot stage
        compiler_params=pltpu.CompilerParams(
            dimension_semantics=("parallel",),
            vmem_limit_bytes=32 << 20,
        ),
    )(xn, ids, packed["w1_num_t"], packed["w_emb_t"], packed["w2"], packed["w3"])

    return out[:, :OUTPUT_SIZE]


# --------------------------------------------------------------------------
# Pure-JAX reference (original, unfolded parameters).
# --------------------------------------------------------------------------
def reference_forward(params, x_numerical, me_ids, ab_ids, st_ids):
    b = x_numerical.shape[0]
    me = jnp.take(params["move_effect_emb"], me_ids, axis=0).reshape(b, -1)
    ab = jnp.take(params["ability_emb"], ab_ids, axis=0).reshape(b, -1)
    st = jnp.take(params["status_emb"], st_ids, axis=0).reshape(b, -1)
    x = jnp.concatenate([x_numerical, me, ab, st], axis=1)
    h1 = jnp.maximum(x @ params["w1"].T + params["b1"], 0.0)
    h2 = jnp.maximum(h1 @ params["w2"].T + params["b2"], 0.0)
    return h2 @ params["w3"].T + params["b3"]


if __name__ == "__main__":
    key = jax.random.PRNGKey(0)
    k_params, k_data = jax.random.split(key, 2)

    params = init_params(k_params)
    packed = prepare_packed_params(params)      # one-time folding / packing

    fwd = jax.jit(network_forward)

    def run_check(batch, kd):
        k_num, k_me, k_ab, k_st = jax.random.split(kd, 4)
        x_numerical = jax.random.normal(k_num, (batch, NUM_NUMERICAL), jnp.float32)
        me_ids = jax.random.randint(k_me, (batch, N_ME_SLOTS), 0, ME_ROWS, dtype=jnp.int32)
        ab_ids = jax.random.randint(k_ab, (batch, N_AB_SLOTS), 0, AB_ROWS, dtype=jnp.int32)
        st_ids = jax.random.randint(k_st, (batch, N_ST_SLOTS), 0, ST_ROWS, dtype=jnp.int32)

        out = jax.block_until_ready(fwd(packed, x_numerical, me_ids, ab_ids, st_ids))
        assert out.shape == (batch, OUTPUT_SIZE), out.shape
        assert out.dtype == jnp.float32

        ref = reference_forward(params, x_numerical, me_ids, ab_ids, st_ids)
        err = jnp.max(jnp.abs(out - ref))
        assert jnp.allclose(out, ref, atol=1e-4, rtol=1e-4), err

    k1, k2 = jax.random.split(k_data)
    run_check(2, k1)     # latency-regime path: single block, grid = 1
    run_check(37, k2)    # multi-tile path: grid = 2 with a partial last block

    print("KERNEL_OK")
</pallas_src>

<mosaic_0001>
module attributes {stable_mosaic.version = 11 : i64} {
  func.func @_fused_kernel(%arg0: i32, %arg1: memref<2x333xf32, #tpu.memory_space<vmem>>, %arg2: memref<2x18xi32, #tpu.memory_space<vmem>>, %arg3: memref<16x333xf32, #tpu.memory_space<vmem>>, %arg4: memref<16x2816xf32, #tpu.memory_space<vmem>>, %arg5: memref<16x16xf32, #tpu.memory_space<vmem>>, %arg6: memref<16x128xf32, #tpu.memory_space<vmem>>, %arg7: memref<2x128xf32, #tpu.memory_space<vmem>>, %arg8: memref<2x2816xf32, #tpu.memory_space<vmem>>) attributes {dimension_semantics = [#tpu.dimension_semantics<parallel>], iteration_bounds = array<i64: 1>, scalar_prefetch = 0 : i64, scratch_operands = 1 : i64, tpu.core_type = #tpu.core_type<tc>, window_params = [{transform_indices = @transform_0, window_bounds = array<i64: 2, 333>}, {transform_indices = @transform_1, window_bounds = array<i64: 2, 18>}, {pipeline_mode = #tpu.pipeline_mode<synchronous>, transform_indices = @transform_2, window_bounds = array<i64: 16, 333>}, {pipeline_mode = #tpu.pipeline_mode<synchronous>, transform_indices = @transform_3, window_bounds = array<i64: 16, 2816>}, {pipeline_mode = #tpu.pipeline_mode<synchronous>, transform_indices = @transform_4, window_bounds = array<i64: 16, 16>}, {pipeline_mode = #tpu.pipeline_mode<synchronous>, transform_indices = @transform_5, window_bounds = array<i64: 16, 128>}, {transform_indices = @transform_6, window_bounds = array<i64: 2, 128>}]} {
    %c0 = arith.constant 0 : index
    %c0_0 = arith.constant 0 : index
    %0 = vector.load %arg2[%c0, %c0_0] : memref<2x18xi32, #tpu.memory_space<vmem>>, vector<2x18xi32>
    %1 = tpu.iota {dimensions = array<i32: 1>} : vector<2x256xi32>
    %2 = tpu.iota {dimensions = array<i32: 1>} : vector<2x128xi32>
    %3 = vector.extract_strided_slice %0 {offsets = [0, 0], sizes = [2, 1], strides = [1, 1]} : vector<2x18xi32> to vector<2x1xi32>
    %4 = vector.broadcast %3 : vector<2x1xi32> to vector<2x256xi32>
    %5 = arith.cmpi eq, %1, %4 : vector<2x256xi32>
    %cst = arith.constant 1.000000e+00 : f32
    %cst_1 = arith.constant 0.000000e+00 : f32
    %6 = vector.broadcast %cst : f32 to vector<2x256xf32>
    %7 = vector.broadcast %cst_1 : f32 to vector<2x256xf32>
    %8 = arith.select %5, %6, %7 : vector<2x256xi1>, vector<2x256xf32>
    %c0_2 = arith.constant 0 : index
    %c0_3 = arith.constant 0 : index
    %9 = vector.load %arg8[%c0_2, %c0_3] : memref<2x2816xf32, #tpu.memory_space<vmem>>, vector<2x256xf32>
    tpu.vector_store %arg8[%c0_2, %c0_3], %8 {strides = array<i32>} : memref<2x2816xf32, #tpu.memory_space<vmem>>, vector<2x256xf32>,
    %10 = vector.extract_strided_slice %0 {offsets = [0, 1], sizes = [2, 1], strides = [1, 1]} : vector<2x18xi32> to vector<2x1xi32>
    %11 = vector.broadcast %10 : vector<2x1xi32> to vector<2x256xi32>
    %12 = arith.cmpi eq, %1, %11 : vector<2x256xi32>
    %cst_4 = arith.constant 1.000000e+00 : f32
    %cst_5 = arith.constant 0.000000e+00 : f32
    %13 = vector.broadcast %cst_4 : f32 to vector<2x256xf32>
    %14 = vector.broadcast %cst_5 : f32 to vector<2x256xf32>
    %15 = arith.select %12, %13, %14 : vector<2x256xi1>, vector<2x256xf32>
    %c0_6 = arith.constant 0 : index
    %c256 = arith.constant 256 : index
    %16 = vector.load %arg8[%c0_6, %c256] : memref<2x2816xf32, #tpu.memory_space<vmem>>, vector<2x256xf32>
    tpu.vector_store %arg8[%c0_6, %c256], %15 {strides = array<i32>} : memref<2x2816xf32, #tpu.memory_space<vmem>>, vector<2x256xf32>,
    %17 = vector.extract_strided_slice %0 {offsets = [0, 2], sizes = [2, 1], strides = [1, 1]} : vector<2x18xi32> to vector<2x1xi32>
    %18 = vector.broadcast %17 : vector<2x1xi32> to vector<2x256xi32>
    %19 = arith.cmpi eq, %1, %18 : vector<2x256xi32>
    %cst_7 = arith.constant 1.000000e+00 : f32
    %cst_8 = arith.constant 0.000000e+00 : f32
    %20 = vector.broadcast %cst_7 : f32 to vector<2x256xf32>
    %21 = vector.broadcast %cst_8 : f32 to vector<2x256xf32>
    %22 = arith.select %19, %20, %21 : vector<2x256xi1>, vector<2x256xf32>
    %c0_9 = arith.constant 0 : index
    %c512 = arith.constant 512 : index
    %23 = vector.load %arg8[%c0_9, %c512] : memref<2x2816xf32, #tpu.memory_space<vmem>>, vector<2x256xf32>
    tpu.vector_store %arg8[%c0_9, %c512], %22 {strides = array<i32>} : memref<2x2816xf32, #tpu.memory_space<vmem>>, vector<2x256xf32>,
    %24 = vector.extract_strided_slice %0 {offsets = [0, 3], sizes = [2, 1], strides = [1, 1]} : vector<2x18xi32> to vector<2x1xi32>
    %25 = vector.broadcast %24 : vector<2x1xi32> to vector<2x256xi32>
    %26 = arith.cmpi eq, %1, %25 : vector<2x256xi32>
    %cst_10 = arith.constant 1.000000e+00 : f32
    %cst_11 = arith.constant 0.000000e+00 : f32
    %27 = vector.broadcast %cst_10 : f32 to vector<2x256xf32>
    %28 = vector.broadcast %cst_11 : f32 to vector<2x256xf32>
    %29 = arith.select %26, %27, %28 : vector<2x256xi1>, vector<2x256xf32>
    %c0_12 = arith.constant 0 : index
    %c768 = arith.constant 768 : index
    %30 = vector.load %arg8[%c0_12, %c768] : memref<2x2816xf32, #tpu.memory_space<vmem>>, vector<2x256xf32>
    tpu.vector_store %arg8[%c0_12, %c768], %29 {strides = array<i32>} : memref<2x2816xf32, #tpu.memory_space<vmem>>, vector<2x256xf32>,
    %31 = vector.extract_strided_slice %0 {offsets = [0, 4], sizes = [2, 1], strides = [1, 1]} : vector<2x18xi32> to vector<2x1xi32>
    %32 = vector.broadcast %31 : vector<2x1xi32> to vector<2x128xi32>
    %33 = arith.cmpi eq, %2, %32 : vector<2x128xi32>
    %cst_13 = arith.constant 1.000000e+00 : f32
    %cst_14 = arith.constant 0.000000e+00 : f32
    %34 = vector.broadcast %cst_13 : f32 to vector<2x128xf32>
    %35 = vector.broadcast %cst_14 : f32 to vector<2x128xf32>
    %36 = arith.select %33, %34, %35 : vector<2x128xi1>, vector<2x128xf32>
    %c0_15 = arith.constant 0 : index
    %c1024 = arith.constant 1024 : index
    %37 = vector.load %arg8[%c0_15, %c1024] : memref<2x2816xf32, #tpu.memory_space<vmem>>, vector<2x128xf32>
    tpu.vector_store %arg8[%c0_15, %c1024], %36 {strides = array<i32>} : memref<2x2816xf32, #tpu.memory_space<vmem>>, vector<2x128xf32>,
    %38 = vector.extract_strided_slice %0 {offsets = [0, 5], sizes = [2, 1], strides = [1, 1]} : vector<2x18xi32> to vector<2x1xi32>
    %39 = vector.broadcast %38 : vector<2x1xi32> to vector<2x128xi32>
    %40 = arith.cmpi eq, %2, %39 : vector<2x128xi32>
    %cst_16 = arith.constant 1.000000e+00 : f32
    %cst_17 = arith.constant 0.000000e+00 : f32
    %41 = vector.broadcast %cst_16 : f32 to vector<2x128xf32>
    %42 = vector.broadcast %cst_17 : f32 to vector<2x128xf32>
    %43 = arith.select %40, %41, %42 : vector<2x128xi1>, vector<2x128xf32>
    %c0_18 = arith.constant 0 : index
    %c1152 = arith.constant 1152 : index
    %44 = vector.load %arg8[%c0_18, %c1152] : memref<2x2816xf32, #tpu.memory_space<vmem>>, vector<2x128xf32>
    tpu.vector_store %arg8[%c0_18, %c1152], %43 {strides = array<i32>} : memref<2x2816xf32, #tpu.memory_space<vmem>>, vector<2x128xf32>,
    %45 = vector.extract_strided_slice %0 {offsets = [0, 6], sizes = [2, 1], strides = [1, 1]} : vector<2x18xi32> to vector<2x1xi32>
    %46 = vector.broadcast %45 : vector<2x1xi32> to vector<2x128xi32>
    %47 = arith.cmpi eq, %2, %46 : vector<2x128xi32>
    %cst_19 = arith.constant 1.000000e+00 : f32
    %cst_20 = arith.constant 0.000000e+00 : f32
    %48 = vector.broadcast %cst_19 : f32 to vector<2x128xf32>
    %49 = vector.broadcast %cst_20 : f32 to vector<2x128xf32>
    %50 = arith.select %47, %48, %49 : vector<2x128xi1>, vector<2x128xf32>
    %c0_21 = arith.constant 0 : index
    %c1280 = arith.constant 1280 : index
    %51 = vector.load %arg8[%c0_21, %c1280] : memref<2x2816xf32, #tpu.memory_space<vmem>>, vector<2x128xf32>
    tpu.vector_store %arg8[%c0_21, %c1280], %50 {strides = array<i32>} : memref<2x2816xf32, #tpu.memory_space<vmem>>, vector<2x128xf32>,
    %52 = vector.extract_strided_slice %0 {offsets = [0, 7], sizes = [2, 1], strides = [1, 1]} : vector<2x18xi32> to vector<2x1xi32>
    %53 = vector.broadcast %52 : vector<2x1xi32> to vector<2x128xi32>
    %54 = arith.cmpi eq, %2, %53 : vector<2x128xi32>
    %cst_22 = arith.constant 1.000000e+00 : f32
    %cst_23 = arith.constant 0.000000e+00 : f32
    %55 = vector.broadcast %cst_22 : f32 to vector<2x128xf32>
    %56 = vector.broadcast %cst_23 : f32 to vector<2x128xf32>
    %57 = arith.select %54, %55, %56 : vector<2x128xi1>, vector<2x128xf32>
    %c0_24 = arith.constant 0 : index
    %c1408 = arith.constant 1408 : index
    %58 = vector.load %arg8[%c0_24, %c1408] : memref<2x2816xf32, #tpu.memory_space<vmem>>, vector<2x128xf32>
    tpu.vector_store %arg8[%c0_24, %c1408], %57 {strides = array<i32>} : memref<2x2816xf32, #tpu.memory_space<vmem>>, vector<2x128xf32>,
    %59 = vector.extract_strided_slice %0 {offsets = [0, 8], sizes = [2, 1], strides = [1, 1]} : vector<2x18xi32> to vector<2x1xi32>
    %60 = vector.broadcast %59 : vector<2x1xi32> to vector<2x128xi32>
    %61 = arith.cmpi eq, %2, %60 : vector<2x128xi32>
    %cst_25 = arith.constant 1.000000e+00 : f32
    %cst_26 = arith.constant 0.000000e+00 : f32
    %62 = vector.broadcast %cst_25 : f32 to vector<2x128xf32>
    %63 = vector.broadcast %cst_26 : f32 to vector<2x128xf32>
    %64 = arith.select %61, %62, %63 : vector<2x128xi1>, vector<2x128xf32>
    %c0_27 = arith.constant 0 : index
    %c1536 = arith.constant 1536 : index
    %65 = vector.load %arg8[%c0_27, %c1536] : memref<2x2816xf32, #tpu.memory_space<vmem>>, vector<2x128xf32>
    tpu.vector_store %arg8[%c0_27, %c1536], %64 {strides = array<i32>} : memref<2x2816xf32, #tpu.memory_space<vmem>>, vector<2x128xf32>,
    %66 = vector.extract_strided_slice %0 {offsets = [0, 9], sizes = [2, 1], strides = [1, 1]} : vector<2x18xi32> to vector<2x1xi32>
    %67 = vector.broadcast %66 : vector<2x1xi32> to vector<2x128xi32>
    %68 = arith.cmpi eq, %2, %67 : vector<2x128xi32>
    %cst_28 = arith.constant 1.000000e+00 : f32
    %cst_29 = arith.constant 0.000000e+00 : f32
    %69 = vector.broadcast %cst_28 : f32 to vector<2x128xf32>
    %70 = vector.broadcast %cst_29 : f32 to vector<2x128xf32>
    %71 = arith.select %68, %69, %70 : vector<2x128xi1>, vector<2x128xf32>
    %c0_30 = arith.constant 0 : index
    %c1664 = arith.constant 1664 : index
    %72 = vector.load %arg8[%c0_30, %c1664] : memref<2x2816xf32, #tpu.memory_space<vmem>>, vector<2x128xf32>
    tpu.vector_store %arg8[%c0_30, %c1664], %71 {strides = array<i32>} : memref<2x2816xf32, #tpu.memory_space<vmem>>, vector<2x128xf32>,
    %73 = vector.extract_strided_slice %0 {offsets = [0, 10], sizes = [2, 1], strides = [1, 1]} : vector<2x18xi32> to vector<2x1xi32>
    %74 = vector.broadcast %73 : vector<2x1xi32> to vector<2x128xi32>
    %75 = arith.cmpi eq, %2, %74 : vector<2x128xi32>
    %cst_31 = arith.constant 1.000000e+00 : f32
    %cst_32 = arith.constant 0.000000e+00 : f32
    %76 = vector.broadcast %cst_31 : f32 to vector<2x128xf32>
    %77 = vector.broadcast %cst_32 : f32 to vector<2x128xf32>
    %78 = arith.select %75, %76, %77 : vector<2x128xi1>, vector<2x128xf32>
    %c0_33 = arith.constant 0 : index
    %c1792 = arith.constant 1792 : index
    %79 = vector.load %arg8[%c0_33, %c1792] : memref<2x2816xf32, #tpu.memory_space<vmem>>, vector<2x128xf32>
    tpu.vector_store %arg8[%c0_33, %c1792], %78 {strides = array<i32>} : memref<2x2816xf32, #tpu.memory_space<vmem>>, vector<2x128xf32>,
    %80 = vector.extract_strided_slice %0 {offsets = [0, 11], sizes = [2, 1], strides = [1, 1]} : vector<2x18xi32> to vector<2x1xi32>
    %81 = vector.broadcast %80 : vector<2x1xi32> to vector<2x128xi32>
    %82 = arith.cmpi eq, %2, %81 : vector<2x128xi32>
    %cst_34 = arith.constant 1.000000e+00 : f32
    %cst_35 = arith.constant 0.000000e+00 : f32
    %83 = vector.broadcast %cst_34 : f32 to vector<2x128xf32>
    %84 = vector.broadcast %cst_35 : f32 to vector<2x128xf32>
    %85 = arith.select %82, %83, %84 : vector<2x128xi1>, vector<2x128xf32>
    %c0_36 = arith.constant 0 : index
    %c1920 = arith.constant 1920 : index
    %86 = vector.load %arg8[%c0_36, %c1920] : memref<2x2816xf32, #tpu.memory_space<vmem>>, vector<2x128xf32>
    tpu.vector_store %arg8[%c0_36, %c1920], %85 {strides = array<i32>} : memref<2x2816xf32, #tpu.memory_space<vmem>>, vector<2x128xf32>,
    %87 = vector.extract_strided_slice %0 {offsets = [0, 12], sizes = [2, 1], strides = [1, 1]} : vector<2x18xi32> to vector<2x1xi32>
    %88 = vector.broadcast %87 : vector<2x1xi32> to vector<2x128xi32>
    %89 = arith.cmpi eq, %2, %88 : vector<2x128xi32>
    %cst_37 = arith.constant 1.000000e+00 : f32
    %cst_38 = arith.constant 0.000000e+00 : f32
    %90 = vector.broadcast %cst_37 : f32 to vector<2x128xf32>
    %91 = vector.broadcast %cst_38 : f32 to vector<2x128xf32>
    %92 = arith.select %89, %90, %91 : vector<2x128xi1>, vector<2x128xf32>
    %c0_39 = arith.constant 0 : index
    %c2048 = arith.constant 2048 : index
    %93 = vector.load %arg8[%c0_39, %c2048] : memref<2x2816xf32, #tpu.memory_space<vmem>>, vector<2x128xf32>
    tpu.vector_store %arg8[%c0_39, %c2048], %92 {strides = array<i32>} : memref<2x2816xf32, #tpu.memory_space<vmem>>, vector<2x128xf32>,
    %94 = vector.extract_strided_slice %0 {offsets = [0, 13], sizes = [2, 1], strides = [1, 1]} : vector<2x18xi32> to vector<2x1xi32>
    %95 = vector.broadcast %94 : vector<2x1xi32> to vector<2x128xi32>
    %96 = arith.cmpi eq, %2, %95 : vector<2x128xi32>
    %cst_40 = arith.constant 1.000000e+00 : f32
    %cst_41 = arith.constant 0.000000e+00 : f32
    %97 = vector.broadcast %cst_40 : f32 to vector<2x128xf32>
    %98 = vector.broadcast %cst_41 : f32 to vector<2x128xf32>
    %99 = arith.select %96, %97, %98 : vector<2x128xi1>, vector<2x128xf32>
    %c0_42 = arith.constant 0 : index
    %c2176 = arith.constant 2176 : index
    %100 = vector.load %arg8[%c0_42, %c2176] : memref<2x2816xf32, #tpu.memory_space<vmem>>, vector<2x128xf32>
    tpu.vector_store %arg8[%c0_42, %c2176], %99 {strides = array<i32>} : memref<2x2816xf32, #tpu.memory_space<vmem>>, vector<2x128xf32>,
    %101 = vector.extract_strided_slice %0 {offsets = [0, 14], sizes = [2, 1], strides = [1, 1]} : vector<2x18xi32> to vector<2x1xi32>
    %102 = vector.broadcast %101 : vector<2x1xi32> to vector<2x128xi32>
    %103 = arith.cmpi eq, %2, %102 : vector<2x128xi32>
    %cst_43 = arith.constant 1.000000e+00 : f32
    %cst_44 = arith.constant 0.000000e+00 : f32
    %104 = vector.broadcast %cst_43 : f32 to vector<2x128xf32>
    %105 = vector.broadcast %cst_44 : f32 to vector<2x128xf32>
    %106 = arith.select %103, %104, %105 : vector<2x128xi1>, vector<2x128xf32>
    %c0_45 = arith.constant 0 : index
    %c2304 = arith.constant 2304 : index
    %107 = vector.load %arg8[%c0_45, %c2304] : memref<2x2816xf32, #tpu.memory_space<vmem>>, vector<2x128xf32>
    tpu.vector_store %arg8[%c0_45, %c2304], %106 {strides = array<i32>} : memref<2x2816xf32, #tpu.memory_space<vmem>>, vector<2x128xf32>,
    %108 = vector.extract_strided_slice %0 {offsets = [0, 15], sizes = [2, 1], strides = [1, 1]} : vector<2x18xi32> to vector<2x1xi32>
    %109 = vector.broadcast %108 : vector<2x1xi32> to vector<2x128xi32>
    %110 = arith.cmpi eq, %2, %109 : vector<2x128xi32>
    %cst_46 = arith.constant 1.000000e+00 : f32
    %cst_47 = arith.constant 0.000000e+00 : f32
    %111 = vector.broadcast %cst_46 : f32 to vector<2x128xf32>
    %112 = vector.broadcast %cst_47 : f32 to vector<2x128xf32>
    %113 = arith.select %110, %111, %112 : vector<2x128xi1>, vector<2x128xf32>
    %c0_48 = arith.constant 0 : index
    %c2432 = arith.constant 2432 : index
    %114 = vector.load %arg8[%c0_48, %c2432] : memref<2x2816xf32, #tpu.memory_space<vmem>>, vector<2x128xf32>
    tpu.vector_store %arg8[%c0_48, %c2432], %113 {strides = array<i32>} : memref<2x2816xf32, #tpu.memory_space<vmem>>, vector<2x128xf32>,
    %115 = vector.extract_strided_slice %0 {offsets = [0, 16], sizes = [2, 1], strides = [1, 1]} : vector<2x18xi32> to vector<2x1xi32>
    %116 = vector.broadcast %115 : vector<2x1xi32> to vector<2x128xi32>
    %117 = arith.cmpi eq, %2, %116 : vector<2x128xi32>
    %cst_49 = arith.constant 1.000000e+00 : f32
    %cst_50 = arith.constant 0.000000e+00 : f32
    %118 = vector.broadcast %cst_49 : f32 to vector<2x128xf32>
    %119 = vector.broadcast %cst_50 : f32 to vector<2x128xf32>
    %120 = arith.select %117, %118, %119 : vector<2x128xi1>, vector<2x128xf32>
    %c0_51 = arith.constant 0 : index
    %c2560 = arith.constant 2560 : index
    %121 = vector.load %arg8[%c0_51, %c2560] : memref<2x2816xf32, #tpu.memory_space<vmem>>, vector<2x128xf32>
    tpu.vector_store %arg8[%c0_51, %c2560], %120 {strides = array<i32>} : memref<2x2816xf32, #tpu.memory_space<vmem>>, vector<2x128xf32>,
    %122 = vector.extract_strided_slice %0 {offsets = [0, 17], sizes = [2, 1], strides = [1, 1]} : vector<2x18xi32> to vector<2x1xi32>
    %123 = vector.broadcast %122 : vector<2x1xi32> to vector<2x128xi32>
    %124 = arith.cmpi eq, %2, %123 : vector<2x128xi32>
    %cst_52 = arith.constant 1.000000e+00 : f32
    %cst_53 = arith.constant 0.000000e+00 : f32
    %125 = vector.broadcast %cst_52 : f32 to vector<2x128xf32>
    %126 = vector.broadcast %cst_53 : f32 to vector<2x128xf32>
    %127 = arith.select %124, %125, %126 : vector<2x128xi1>, vector<2x128xf32>
    %c0_54 = arith.constant 0 : index
    %c2688 = arith.constant 2688 : index
    %128 = vector.load %arg8[%c0_54, %c2688] : memref<2x2816xf32, #tpu.memory_space<vmem>>, vector<2x128xf32>
    tpu.vector_store %arg8[%c0_54, %c2688], %127 {strides = array<i32>} : memref<2x2816xf32, #tpu.memory_space<vmem>>, vector<2x128xf32>,
    %c0_55 = arith.constant 0 : index
    %c0_56 = arith.constant 0 : index
    %129 = vector.load %arg1[%c0_55, %c0_56] : memref<2x333xf32, #tpu.memory_space<vmem>>, vector<2x333xf32>
    %c0_57 = arith.constant 0 : index
    %c0_58 = arith.constant 0 : index
    %130 = vector.load %arg3[%c0_57, %c0_58] : memref<16x333xf32, #tpu.memory_space<vmem>>, vector<16x333xf32>
    %cst_59 = arith.constant dense<0.000000e+00> : vector<2x16xf32>
    %131 = tpu.matmul %129, %130, %cst_59 {dimension_numbers = #tpu.dot_dimension_numbers<[1], [1], [0], [0], [0, 0, 1, 0], [], []>} : vector<2x333xf32>, vector<16x333xf32>, vector<2x16xf32> -> vector<2x16xf32>
    %c0_60 = arith.constant 0 : index
    %c0_61 = arith.constant 0 : index
    %132 = vector.load %arg8[%c0_60, %c0_61] : memref<2x2816xf32, #tpu.memory_space<vmem>>, vector<2x2816xf32>
    %c0_62 = arith.constant 0 : index
    %c0_63 = arith.constant 0 : index
    %133 = vector.load %arg4[%c0_62, %c0_63] : memref<16x2816xf32, #tpu.memory_space<vmem>>, vector<16x2816xf32>
    %cst_64 = arith.constant dense<0.000000e+00> : vector<2x16xf32>
    %134 = tpu.matmul %132, %133, %cst_64 {dimension_numbers = #tpu.dot_dimension_numbers<[1], [1], [0], [0], [0, 0, 1, 0], [], []>} : vector<2x2816xf32>, vector<16x2816xf32>, vector<2x16xf32> -> vector<2x16xf32>
    %135 = arith.addf %131, %134 : vector<2x16xf32>
    %cst_65 = arith.constant 0.000000e+00 : f32
    %136 = vector.broadcast %cst_65 : f32 to vector<2x16xf32>
    %137 = arith.maximumf %135, %136 : vector<2x16xf32>
    %c0_66 = arith.constant 0 : index
    %c0_67 = arith.constant 0 : index
    %138 = vector.load %arg5[%c0_66, %c0_67] : memref<16x16xf32, #tpu.memory_space<vmem>>, vector<16x16xf32>
    %cst_68 = arith.constant dense<0.000000e+00> : vector<2x16xf32>
    %139 = tpu.matmul %137, %138, %cst_68 {dimension_numbers = #tpu.dot_dimension_numbers<[1], [0], [0], [1], [0, 0, 1, 1], [], []>} : vector<2x16xf32>, vector<16x16xf32>, vector<2x16xf32> -> vector<2x16xf32>
    %cst_69 = arith.constant 0.000000e+00 : f32
    %140 = vector.broadcast %cst_69 : f32 to vector<2x16xf32>
    %141 = arith.maximumf %139, %140 : vector<2x16xf32>
    %c0_70 = arith.constant 0 : index
    %c0_71 = arith.constant 0 : index
    %142 = vector.load %arg6[%c0_70, %c0_71] : memref<16x128xf32, #tpu.memory_space<vmem>>, vector<16x128xf32>
    %cst_72 = arith.constant dense<0.000000e+00> : vector<2x128xf32>
    %143 = tpu.matmul %141, %142, %cst_72 {dimension_numbers = #tpu.dot_dimension_numbers<[1], [0], [0], [1], [0, 0, 1, 1], [], []>} : vector<2x16xf32>, vector<16x128xf32>, vector<2x128xf32> -> vector<2x128xf32>
    %c0_73 = arith.constant 0 : index
    %c0_74 = arith.constant 0 : index
    %144 = vector.load %arg7[%c0_73, %c0_74] : memref<2x128xf32, #tpu.memory_space<vmem>>, vector<2x128xf32>
    tpu.vector_store %arg7[%c0_73, %c0_74], %143 {strides = array<i32>} : memref<2x128xf32, #tpu.memory_space<vmem>>, vector<2x128xf32>,
    return
  }
  func.func @transform_0(%arg0: i32) -> (i32, i32) {
    %c0_i32 = arith.constant 0 : i32
    %c0_i32_0 = arith.constant 0 : i32
    return %arg0, %c0_i32 : i32, i32
  }
  func.func @transform_1(%arg0: i32) -> (i32, i32) {
    %c0_i32 = arith.constant 0 : i32
    %c0_i32_0 = arith.constant 0 : i32
    return %arg0, %c0_i32 : i32, i32
  }
  func.func @transform_2(%arg0: i32) -> (i32, i32) {
    %c0_i32 = arith.constant 0 : i32
    %c0_i32_0 = arith.constant 0 : i32
    %c0_i32_1 = arith.constant 0 : i32
    return %c0_i32, %c0_i32_0 : i32, i32
  }
  func.func @transform_3(%arg0: i32) -> (i32, i32) {
    %c0_i32 = arith.constant 0 : i32
    %c0_i32_0 = arith.constant 0 : i32
    %c0_i32_1 = arith.constant 0 : i32
    return %c0_i32, %c0_i32_0 : i32, i32
  }
  func.func @transform_4(%arg0: i32) -> (i32, i32) {
    %c0_i32 = arith.constant 0 : i32
    %c0_i32_0 = arith.constant 0 : i32
    %c0_i32_1 = arith.constant 0 : i32
    return %c0_i32, %c0_i32_0 : i32, i32
  }
  func.func @transform_5(%arg0: i32) -> (i32, i32) {
    %c0_i32 = arith.constant 0 : i32
    %c0_i32_0 = arith.constant 0 : i32
    %c0_i32_1 = arith.constant 0 : i32
    return %c0_i32, %c0_i32_0 : i32, i32
  }
  func.func @transform_6(%arg0: i32) -> (i32, i32) {
    %c0_i32 = arith.constant 0 : i32
    %c0_i32_0 = arith.constant 0 : i32
    return %arg0, %c0_i32 : i32, i32
  }
}

</mosaic_0001>

<llo_original>
// kernel: network_forward.1
$region0: #{network_forward.1}
  #allocation0 [shape = 'u32[]', space=smem, size = 0x4, offset = 0x4, fixed_abs, tag = 'smem constant byte address 0x4 - core index']
  #allocation1 [shape = 'u32[72,128]{1,0:T(1,128)}', space=vmem, size = 0x9000, scoped, tag = 'internal scratch']
  #allocation2 [shape = 'f32[2,2816]{1,0:T(2,128)}', space=vmem, size = 0x5800, scoped, tag = 'scratch operand']
  %s0 = inlined_call_operand.vmem [shape: f32[2,333], index: 0, kind: input, shape index: {}]
  %s1 = inlined_call_operand.vmem [shape: s32[2,18], index: 1, kind: input, shape index: {}]
  %s2 = inlined_call_operand.hbm [shape: f32[16,333], index: 2, kind: input, shape index: {}]
  %s3 = inlined_call_operand.hbm [shape: f32[16,2816], index: 3, kind: input, shape index: {}]
  %s4 = inlined_call_operand.hbm [shape: f32[16,16], index: 4, kind: input, shape index: {}]
  %s5 = inlined_call_operand.hbm [shape: f32[16,128], index: 5, kind: input, shape index: {}]
  %s6 = inlined_call_operand.hbm [shape: f32[2,128], index: 6, kind: output, shape index: {}]
  %s7 = sld [smem:[#allocation0]]
  $region50: #{network_forward.1} parent=0
    _
  %s9 = ssub.s32 1, %s7
  %s10 = scalar_select 0, %s9, %s7
  $region1: #{network_forward.1} parent=0
    #allocation3 [shape = 'u8[24576]{0}', space=vmem, size = 0x6000, scoped, tag = 'input window, operand 2, single buffered']
    #allocation4 [shape = 's32[1]{0}', space=sflag, size = 0x4, scoped, tag = 'scoped memory for network_forward.1']
    #allocation5 [shape = 's32[1]{0}', space=sflag, size = 0x4, scoped, tag = 'scoped memory for network_forward.1']
    #allocation6 [shape = 'u8[180224]{0}', space=vmem, size = 0x2c000, scoped, tag = 'input window, operand 3, single buffered']
    #allocation7 [shape = 's32[1]{0}', space=sflag, size = 0x4, scoped, tag = 'scoped memory for network_forward.1']
    #allocation8 [shape = 'u8[8192]{0}', space=vmem, size = 0x2000, scoped, tag = 'input window, operand 4, single buffered']
    #allocation9 [shape = 'u8[8192]{0}', space=vmem, size = 0x2000, scoped, tag = 'input window, operand 5, single buffered']
    #allocation10 [shape = 's32[1]{0}', space=sflag, size = 0x4, scoped, tag = 'scoped memory for network_forward.1']
    #allocation11 [shape = 'u8[1024]{0}', space=vmem, size = 0x400, scoped, tag = 'output window, operand 0, single buffered']
    %11 = vsyncpa [#allocation4], 0
    %12 = vsyncpa [#allocation7], 0
    %13 = vsyncpa [#allocation10], 0
    %14 = vsyncpa [#allocation5], 0
    // Predicated region
    $region2: #{network_forward.1} parent=1 // pred_check
      _
    $region3: #{network_forward.1} parent=1 // pred_check_branch
      %16 = sbr.rel (0) target = $region5
    $region4: #{network_forward.1} parent=1 // pred_region
      _
    $region5: #{network_forward.1} parent=1 // pred_fallthru
      _
    // Predicated region
    $region6: #{network_forward.1} parent=1 // pred_check
      _
    $region7: #{network_forward.1} parent=1 // pred_check_branch
      %18 = sbr.rel (0) target = $region9
    $region8: #{network_forward.1} parent=1 // pred_region
      _
    $region9: #{network_forward.1} parent=1 // pred_fallthru
      _
    // Predicated region
    $region10: #{network_forward.1} parent=1 // pred_check
      _
    $region11: #{network_forward.1} parent=1 // pred_check_branch
      %20 = sbr.rel (0) target = $region13
    $region12: #{network_forward.1} parent=1 // pred_region
      %22 = vsyncadd [#allocation4], 0
      %s23 = sshll.u32 %s2, 4
      %s24 = int_to_ptr.hbm [resolvable:$true] %s23
      %s25 = sshll.u32 [#allocation3], 4
      %s26 = int_to_ptr.vmem [resolvable:$true] %s25
      %31 = dma.hbm_to_vmem [thread:$0]  %s24, 768, %s26, [#allocation4], 384, 384, 24
    $region13: #{network_forward.1} parent=1 // pred_fallthru
      _
    // Predicated region
    $region14: #{network_forward.1} parent=1 // pred_check
      _
    $region15: #{network_forward.1} parent=1 // pred_check_branch
      %33 = sbr.rel (0) target = $region17
    $region16: #{network_forward.1} parent=1 // pred_region
      %35 = vsyncadd [#allocation7], 0
      %s36 = sshll.u32 %s3, 4
      %s37 = int_to_ptr.hbm [resolvable:$true] %s36
      %s38 = sshll.u32 [#allocation6], 4
      %s39 = int_to_ptr.vmem [resolvable:$true] %s38
      %44 = dma.hbm_to_vmem [thread:$0]  %s37, 5632, %s39, [#allocation7], 2816, 2816, 176
    $region17: #{network_forward.1} parent=1 // pred_fallthru
      _
    // Predicated region
    $region18: #{network_forward.1} parent=1 // pred_check
      _
    $region19: #{network_forward.1} parent=1 // pred_check_branch
      %46 = sbr.rel (0) target = $region21
    $region20: #{network_forward.1} parent=1 // pred_region
      %48 = vsyncadd [#allocation7], 0
      %s49 = sshll.u32 %s4, 4
      %s50 = int_to_ptr.hbm [resolvable:$true] %s49
      %s51 = sshll.u32 [#allocation8], 4
      %s52 = int_to_ptr.vmem [resolvable:$true] %s51
      %57 = dma.hbm_to_vmem [thread:$0]  %s50, 256, %s52, [#allocation7], 128, 128, 8
    $region21: #{network_forward.1} parent=1 // pred_fallthru
      _
    // Predicated region
    $region22: #{network_forward.1} parent=1 // pred_check
      _
    $region23: #{network_forward.1} parent=1 // pred_check_branch
      %59 = sbr.rel (0) target = $region25
    $region24: #{network_forward.1} parent=1 // pred_region
      %61 = vsyncadd [#allocation10], 0
      %s62 = sshll.u32 %s5, 4
      %s63 = int_to_ptr.hbm [resolvable:$true] %s62
      %s64 = sshll.u32 [#allocation9], 4
      %s65 = int_to_ptr.vmem [resolvable:$true] %s64
      %70 = dma.hbm_to_vmem [thread:$0]  %s63, 256, %s65, [#allocation10], 128, 128, 8
    $region25: #{network_forward.1} parent=1 // pred_fallthru
      _
    // Predicated region
    $region26: #{network_forward.1} parent=1 // pred_check
      _
    $region27: #{network_forward.1} parent=1 // pred_check_branch
      %72 = sbr.rel (0) target = $region29
    $region28: #{network_forward.1} parent=1 // pred_region
      %74 = dma.done [#allocation4], 768
    $region29: #{network_forward.1} parent=1 // pred_fallthru
      _
    // Predicated region
    $region30: #{network_forward.1} parent=1 // pred_check
      _
    $region31: #{network_forward.1} parent=1 // pred_check_branch
      %76 = sbr.rel (0) target = $region33
    $region32: #{network_forward.1} parent=1 // pred_region
      %78 = dma.done [#allocation7], 5632
    $region33: #{network_forward.1} parent=1 // pred_fallthru
      _
    // Predicated region
    $region34: #{network_forward.1} parent=1 // pred_check
      _
    $region35: #{network_forward.1} parent=1 // pred_check_branch
      %80 = sbr.rel (0) target = $region37
    $region36: #{network_forward.1} parent=1 // pred_region
      %82 = dma.done [#allocation7], 256
    $region37: #{network_forward.1} parent=1 // pred_fallthru
      _
    // Predicated region
    $region38: #{network_forward.1} parent=1 // pred_check
      _
    $region39: #{network_forward.1} parent=1 // pred_check_branch
      %84 = sbr.rel (0) target = $region41
    $region40: #{network_forward.1} parent=1 // pred_region
      %86 = dma.done [#allocation10], 256
    $region41: #{network_forward.1} parent=1 // pred_fallthru
      _
    %v87 = vld [vmem:[%s1] sm:$0x3]
    %v88 = vlaneseq
    %v89 = vand.u32 %v88, 127
    %v90 = vadd.s32 %v89, 128
    %91 = vset.pattern.permute.xlu0 0
    %92 = vperm.xlu0 %91, %v87
    %v93 = vpop.permute.xlu0 %92
    %vm94 = vcmp.eq.s32.totalorder %v89, %v93
    %vm95 = vcmp.eq.s32.totalorder %v90, %v93
    %v96 = vsel %vm94, 1.0, 0.0
    %v97 = vsel %vm95, 1.0, 0.0
    %v100 = vrot.slane %v97, 6
    %vm101 = vcmask 1041408
    %v102 = vsel %vm101, %v96, %v100
    %104 = vst [vmem:[#allocation2] sm:$0xf] %v102
    %105 = vset.pattern.permute.xlu0 1
    %106 = vperm.xlu0 %105, %v87
    %v107 = vpop.permute.xlu0 %106
    %vm108 = vcmp.eq.s32.totalorder %v89, %v107
    %vm109 = vcmp.eq.s32.totalorder %v90, %v107
    %v110 = vsel %vm108, 1.0, 0.0
    %v111 = vsel %vm109, 1.0, 0.0
    %v114 = vrot.slane %v111, 6
    %v115 = vsel %vm101, %v110, %v114
    %117 = vst [vmem:[#allocation2 + $0x4] sm:$0xf] %v115
    %118 = vset.pattern.permute.xlu0 2
    %119 = vperm.xlu0 %118, %v87
    %v120 = vpop.permute.xlu0 %119
    %vm121 = vcmp.eq.s32.totalorder %v89, %v120
    %vm122 = vcmp.eq.s32.totalorder %v90, %v120
    %v123 = vsel %vm121, 1.0, 0.0
    %v124 = vsel %vm122, 1.0, 0.0
    %v127 = vrot.slane %v124, 6
    %v128 = vsel %vm101, %v123, %v127
    %130 = vst [vmem:[#allocation2 + $0x8] sm:$0xf] %v128
    %131 = vset.pattern.permute.xlu0 3
    %132 = vperm.xlu0 %131, %v87
    %v133 = vpop.permute.xlu0 %132
    %vm134 = vcmp.eq.s32.totalorder %v89, %v133
    %vm135 = vcmp.eq.s32.totalorder %v90, %v133
    %v136 = vsel %vm134, 1.0, 0.0
    %v137 = vsel %vm135, 1.0, 0.0
    %v140 = vrot.slane %v137, 6
    %v141 = vsel %vm101, %v136, %v140
    %143 = vst [vmem:[#allocation2 + $0xc] sm:$0xf] %v141
    %144 = vset.pattern.permute.xlu0 4
    %145 = vperm.xlu0 %144, %v87
    %v146 = vpop.permute.xlu0 %145
    %vm147 = vcmp.eq.s32.totalorder %v89, %v146
    %v148 = vsel %vm147, 1.0, 0.0
    %149 = vst [vmem:[#allocation2 + $0x10] sm:$0x3] %v148
    %150 = vset.pattern.permute.xlu0 5
    %151 = vperm.xlu0 %150, %v87
    %v152 = vpop.permute.xlu0 %151
    %vm153 = vcmp.eq.s32.totalorder %v89, %v152
    %v154 = vsel %vm153, 1.0, 0.0
    %155 = vst [vmem:[#allocation2 + $0x12] sm:$0x3] %v154
    %156 = vset.pattern.permute.xlu0 6
    %157 = vperm.xlu0 %156, %v87
    %v158 = vpop.permute.xlu0 %157
    %vm159 = vcmp.eq.s32.totalorder %v89, %v158
    %v160 = vsel %vm159, 1.0, 0.0
    %161 = vst [vmem:[#allocation2 + $0x14] sm:$0x3] %v160
    %162 = vset.pattern.permute.xlu0 7
    %163 = vperm.xlu0 %162, %v87
    %v164 = vpop.permute.xlu0 %163
    %vm165 = vcmp.eq.s32.totalorder %v89, %v164
    %v166 = vsel %vm165, 1.0, 0.0
    %167 = vst [vmem:[#allocation2 + $0x16] sm:$0x3] %v166
    %168 = vset.pattern.permute.xlu0 8
    %169 = vperm.xlu0 %168, %v87
    %v170 = vpop.permute.xlu0 %169
    %vm171 = vcmp.eq.s32.totalorder %v89, %v170
    %v172 = vsel %vm171, 1.0, 0.0
    %173 = vst [vmem:[#allocation2 + $0x18] sm:$0x3] %v172
    %174 = vset.pattern.permute.xlu0 9
    %175 = vperm.xlu0 %174, %v87
    %v176 = vpop.permute.xlu0 %175
    %vm177 = vcmp.eq.s32.totalorder %v89, %v176
    %v178 = vsel %vm177, 1.0, 0.0
    %179 = vst [vmem:[#allocation2 + $0x1a] sm:$0x3] %v178
    %180 = vset.pattern.permute.xlu0 10
    %181 = vperm.xlu0 %180, %v87
    %v182 = vpop.permute.xlu0 %181
    %vm183 = vcmp.eq.s32.totalorder %v89, %v182
    %v184 = vsel %vm183, 1.0, 0.0
    %185 = vst [vmem:[#allocation2 + $0x1c] sm:$0x3] %v184
    %186 = vset.pattern.permute.xlu0 11
    %187 = vperm.xlu0 %186, %v87
    %v188 = vpop.permute.xlu0 %187
    %vm189 = vcmp.eq.s32.totalorder %v89, %v188
    %v190 = vsel %vm189, 1.0, 0.0
    %191 = vst [vmem:[#allocation2 + $0x1e] sm:$0x3] %v190
    %192 = vset.pattern.permute.xlu0 12
    %193 = vperm.xlu0 %192, %v87
    %v194 = vpop.permute.xlu0 %193
    %vm195 = vcmp.eq.s32.totalorder %v89, %v194
    %v196 = vsel %vm195, 1.0, 0.0
    %197 = vst [vmem:[#allocation2 + $0x20] sm:$0x3] %v196
    %198 = vset.pattern.permute.xlu0 13
    %199 = vperm.xlu0 %198, %v87
    %v200 = vpop.permute.xlu0 %199
    %vm201 = vcmp.eq.s32.totalorder %v89, %v200
    %v202 = vsel %vm201, 1.0, 0.0
    %203 = vst [vmem:[#allocation2 + $0x22] sm:$0x3] %v202
    %204 = vset.pattern.permute.xlu0 14
    %205 = vperm.xlu0 %204, %v87
    %v206 = vpop.permute.xlu0 %205
    %vm207 = vcmp.eq.s32.totalorder %v89, %v206
    %v208 = vsel %vm207, 1.0, 0.0
    %209 = vst [vmem:[#allocation2 + $0x24] sm:$0x3] %v208
    %210 = vset.pattern.permute.xlu0 15
    %211 = vperm.xlu0 %210, %v87
    %v212 = vpop.permute.xlu0 %211
    %vm213 = vcmp.eq.s32.totalorder %v89, %v212
    %v214 = vsel %vm213, 1.0, 0.0
    %215 = vst [vmem:[#allocation2 + $0x26] sm:$0x3] %v214
    %216 = vset.pattern.permute.xlu0 16
    %217 = vperm.xlu0 %216, %v87
    %v218 = vpop.permute.xlu0 %217
    %vm219 = vcmp.eq.s32.totalorder %v89, %v218
    %v220 = vsel %vm219, 1.0, 0.0
    %221 = vst [vmem:[#allocation2 + $0x28] sm:$0x3] %v220
    %222 = vset.pattern.permute.xlu0 17
    %223 = vperm.xlu0 %222, %v87
    %v224 = vpop.permute.xlu0 %223
    %vm225 = vcmp.eq.s32.totalorder %v89, %v224
    %v226 = vsel %vm225, 1.0, 0.0
    %227 = vst [vmem:[#allocation2 + $0x2a] sm:$0x3] %v226
    %v228 = vld [vmem:[%s0] sm:$0x3f]
    %v229 = vld [vmem:[#allocation3] sm:$0xff]
    %v230 = vld [vmem:[#allocation3 + $0x8] sm:$0xff]
    %v231 = vld [vmem:[#allocation3 + $0x10] sm:$0xff]
    %v232 = vld [vmem:[#allocation3 + $0x18] sm:$0xff]
    %v233 = vld [vmem:[#allocation3 + $0x20] sm:$0xff]
    %v234 = vld [vmem:[#allocation3 + $0x28] sm:$0xff]
    %v235 = vld [vmem:[#allocation2] sm:$0xff]
    %v236 = vld [vmem:[#allocation2 + $0x8] sm:$0xff]
    %v237 = vld [vmem:[#allocation2 + $0x10] sm:$0xff]
    %v238 = vld [vmem:[#allocation2 + $0x18] sm:$0xff]
    %v239 = vld [vmem:[#allocation2 + $0x20] sm:$0xff]
    %v240 = vld [vmem:[#allocation2 + $0x28] sm:$0xf]
    %v241 = vld [vmem:[#allocation6] sm:$0xff]
    %v242 = vld [vmem:[#allocation6 + $0x8] sm:$0xff]
    %v243 = vld [vmem:[#allocation6 + $0x10] sm:$0xff]
    %v244 = vld [vmem:[#allocation6 + $0x18] sm:$0xff]
    %v245 = vld [vmem:[#allocation6 + $0x20] sm:$0xff]
    %v246 = vld [vmem:[#allocation6 + $0x28] sm:$0xff]
    %v247 = vld [vmem:[#allocation6 + $0x30] sm:$0xff]
    %v248 = vld [vmem:[#allocation6 + $0x38] sm:$0xff]
    %v249 = vld [vmem:[#allocation6 + $0x40] sm:$0xff]
    %v250 = vld [vmem:[#allocation6 + $0x48] sm:$0xff]
    %v251 = vld [vmem:[#allocation6 + $0x50] sm:$0xff]
    %v252 = vld [vmem:[#allocation6 + $0x58] sm:$0xff]
    %v253 = vld [vmem:[#allocation6 + $0x60] sm:$0xff]
    %v254 = vld [vmem:[#allocation6 + $0x68] sm:$0xff]
    %v255 = vld [vmem:[#allocation6 + $0x70] sm:$0xff]
    %v256 = vld [vmem:[#allocation6 + $0x78] sm:$0xff]
    %v257 = vld [vmem:[#allocation6 + $0x80] sm:$0xff]
    %v258 = vld [vmem:[#allocation6 + $0x88] sm:$0xff]
    %v259 = vld [vmem:[#allocation6 + $0x90] sm:$0xff]
    %v260 = vld [vmem:[#allocation6 + $0x98] sm:$0xff]
    %v261 = vld [vmem:[#allocation6 + $0xa0] sm:$0xff]
    %v262 = vld [vmem:[#allocation6 + $0xa8] sm:$0xff]
    %v263 = vld [vmem:[#allocation6 + $0xb0] sm:$0xff]
    %v264 = vld [vmem:[#allocation6 + $0xb8] sm:$0xff]
    %v265 = vld [vmem:[#allocation6 + $0xc0] sm:$0xff]
    %v266 = vld [vmem:[#allocation6 + $0xc8] sm:$0xff]
    %v267 = vld [vmem:[#allocation6 + $0xd0] sm:$0xff]
    %v268 = vld [vmem:[#allocation6 + $0xd8] sm:$0xff]
    %v269 = vld [vmem:[#allocation6 + $0xe0] sm:$0xff]
    %v270 = vld [vmem:[#allocation6 + $0xe8] sm:$0xff]
    %v271 = vld [vmem:[#allocation6 + $0xf0] sm:$0xff]
    %v272 = vld [vmem:[#allocation6 + $0xf8] sm:$0xff]
    %v273 = vld [vmem:[#allocation6 + $0x100] sm:$0xff]
    %v274 = vld [vmem:[#allocation6 + $0x108] sm:$0xff]
    %v275 = vld [vmem:[#allocation6 + $0x110] sm:$0xff]
    %v276 = vld [vmem:[#allocation6 + $0x118] sm:$0xff]
    %v277 = vld [vmem:[#allocation6 + $0x120] sm:$0xff]
    %v278 = vld [vmem:[#allocation6 + $0x128] sm:$0xff]
    %v279 = vld [vmem:[#allocation6 + $0x130] sm:$0xff]
    %v280 = vld [vmem:[#allocation6 + $0x138] sm:$0xff]
    %v281 = vld [vmem:[#allocation6 + $0x140] sm:$0xff]
    %v282 = vld [vmem:[#allocation6 + $0x148] sm:$0xff]
    %v283 = vld [vmem:[#allocation6 + $0x150] sm:$0xff]
    %v284 = vld [vmem:[#allocation6 + $0x158] sm:$0xff]
    %291 = vst [vmem:[#allocation1] ss:$4 sm:$0xff] %v235
    %s292 = scalar_lea.vmem [#allocation1], 32
    %293 = vst [vmem:[%s292] ss:$4 sm:$0xff] %v236
    %v294 = vld.sshfl [vmem:[#allocation1] sm:$0xff pattern:$0x73625140]
    %v295 = vld.sshfl [vmem:[#allocation1 + $0x8] sm:$0xff pattern:$0x73625140]
    %v296 = vld.sshfl [vmem:[#allocation1 + $0x10] sm:$0xff pattern:$0x73625140]
    %v297 = vld.sshfl [vmem:[#allocation1 + $0x18] sm:$0xff pattern:$0x73625140]
    %v298 = vld.sshfl [vmem:[#allocation1 + $0x20] sm:$0xff pattern:$0x73625140]
    %v299 = vld.sshfl [vmem:[#allocation1 + $0x28] sm:$0xff pattern:$0x73625140]
    %v300 = vld.sshfl [vmem:[#allocation1 + $0x30] sm:$0xff pattern:$0x73625140]
    %v301 = vld.sshfl [vmem:[#allocation1 + $0x38] sm:$0xff pattern:$0x73625140]
    %302 = vst [vmem:[#allocation1] ss:$4 sm:$0xff] %v237
    %303 = vst [vmem:[%s292] ss:$4 sm:$0xff] %v238
    %v304 = vld.sshfl [vmem:[#allocation1] sm:$0xff pattern:$0x73625140]
    %v305 = vld.sshfl [vmem:[#allocation1 + $0x8] sm:$0xff pattern:$0x73625140]
    %v306 = vld.sshfl [vmem:[#allocation1 + $0x10] sm:$0xff pattern:$0x73625140]
    %v307 = vld.sshfl [vmem:[#allocation1 + $0x18] sm:$0xff pattern:$0x73625140]
    %v308 = vld.sshfl [vmem:[#allocation1 + $0x20] sm:$0xff pattern:$0x73625140]
    %v309 = vld.sshfl [vmem:[#allocation1 + $0x28] sm:$0xff pattern:$0x73625140]
    %v310 = vld.sshfl [vmem:[#allocation1 + $0x30] sm:$0xff pattern:$0x73625140]
    %v311 = vld.sshfl [vmem:[#allocation1 + $0x38] sm:$0xff pattern:$0x73625140]
    %312 = vst [vmem:[#allocation1] ss:$4 sm:$0xff] %v239
    %313 = vst [vmem:[%s292] ss:$4 sm:$0xff] %v240
    %v314 = vld.sshfl [vmem:[#allocation1] sm:$0xff pattern:$0x73625140]
    %v315 = vld.sshfl [vmem:[#allocation1 + $0x8] sm:$0xff pattern:$0x73625140]
    %v316 = vld.sshfl [vmem:[#allocation1 + $0x10] sm:$0xff pattern:$0x73625140]
    %v317 = vld.sshfl [vmem:[#allocation1 + $0x18] sm:$0xff pattern:$0x73625140]
    %v318 = vld.sshfl [vmem:[#allocation1 + $0x20] sm:$0xff pattern:$0x73625140]
    %v319 = vld.sshfl [vmem:[#allocation1 + $0x28] sm:$0xff pattern:$0x73625140]
    %342 = vmatpush.xpose.msra.mxu0 0.0
    %343 = vmatpush.xpose.msra.mxu0 0.0
    %344 = vmatpush.xpose.msra.mxu0 0.0
    %345 = vmatpush.xpose.msra.mxu0 0.0
    %346 = vmatpush.xpose.msra.mxu0 0.0
    %347 = vmatpush.xpose.msra.mxu0 0.0
    %348 = vmatpush.xpose.msra.mxu0 0.0
    %349 = vmatpush.xpose.msra.mxu0 0.0
    %350 = vmatpush.xpose.msra.mxu0 0.0
    %351 = vmatpush.xpose.msra.mxu0 0.0
    %352 = vmatpush.xpose.msra.mxu0 0.0
    %353 = vmatpush.xpose.msra.mxu0 0.0
    %354 = vmatpush.xpose.msra.mxu0 0.0
    %355 = vmatpush.xpose.msra.mxu0 0.0
    %356 = vmatpush.xpose.msra.mxu0 %v263
    %357 = vmatpush.xpose.msra.mxu0 %v241
    %358 = vmatmul.f32.gmra.mxu0 %v294
    %v359 = vpop.f32.mrf.mxu0
    %v360 = vadd.f32 0.0, %v359
    %361 = vdwg.mxu0
    %362 = vmatpush.xpose.msra.mxu0 0.0
    %363 = vmatpush.xpose.msra.mxu0 0.0
    %364 = vmatpush.xpose.msra.mxu0 0.0
    %365 = vmatpush.xpose.msra.mxu0 0.0
    %366 = vmatpush.xpose.msra.mxu0 0.0
    %367 = vmatpush.xpose.msra.mxu0 0.0
    %368 = vmatpush.xpose.msra.mxu0 0.0
    %369 = vmatpush.xpose.msra.mxu0 0.0
    %370 = vmatpush.xpose.msra.mxu0 0.0
    %371 = vmatpush.xpose.msra.mxu0 0.0
    %372 = vmatpush.xpose.msra.mxu0 0.0
    %373 = vmatpush.xpose.msra.mxu0 0.0
    %374 = vmatpush.xpose.msra.mxu0 0.0
    %375 = vmatpush.xpose.msra.mxu0 0.0
    %376 = vmatpush.xpose.msra.mxu0 %v264
    %377 = vmatpush.xpose.msra.mxu0 %v242
    %378 = vmatmul.f32.gmra.mxu0 %v295
    %v379 = vpop.f32.mrf.mxu0
    %v380 = vadd.f32 %v360, %v379
    %381 = vdwg.mxu0
    %382 = vmatpush.xpose.msra.mxu0 0.0
    %383 = vmatpush.xpose.msra.mxu0 0.0
    %384 = vmatpush.xpose.msra.mxu0 0.0
    %385 = vmatpush.xpose.msra.mxu0 0.0
    %386 = vmatpush.xpose.msra.mxu0 0.0
    %387 = vmatpush.xpose.msra.mxu0 0.0
    %388 = vmatpush.xpose.msra.mxu0 0.0
    %389 = vmatpush.xpose.msra.mxu0 0.0
    %390 = vmatpush.xpose.msra.mxu0 0.0
    %391 = vmatpush.xpose.msra.mxu0 0.0
    %392 = vmatpush.xpose.msra.mxu0 0.0
    %393 = vmatpush.xpose.msra.mxu0 0.0
    %394 = vmatpush.xpose.msra.mxu0 0.0
    %395 = vmatpush.xpose.msra.mxu0 0.0
    %396 = vmatpush.xpose.msra.mxu0 %v265
    %397 = vmatpush.xpose.msra.mxu0 %v243
    %398 = vmatmul.f32.gmra.mxu0 %v296
    %v399 = vpop.f32.mrf.mxu0
    %v400 = vadd.f32 %v380, %v399
    %401 = vdwg.mxu0
    %402 = vmatpush.xpose.msra.mxu0 0.0
    %403 = vmatpush.xpose.msra.mxu0 0.0
    %404 = vmatpush.xpose.msra.mxu0 0.0
    %405 = vmatpush.xpose.msra.mxu0 0.0
    %406 = vmatpush.xpose.msra.mxu0 0.0
    %407 = vmatpush.xpose.msra.mxu0 0.0
    %408 = vmatpush.xpose.msra.mxu0 0.0
    %409 = vmatpush.xpose.msra.mxu0 0.0
    %410 = vmatpush.xpose.msra.mxu0 0.0
    %411 = vmatpush.xpose.msra.mxu0 0.0
    %412 = vmatpush.xpose.msra.mxu0 0.0
    %413 = vmatpush.xpose.msra.mxu0 0.0
    %414 = vmatpush.xpose.msra.mxu0 0.0
    %415 = vmatpush.xpose.msra.mxu0 0.0
    %416 = vmatpush.xpose.msra.mxu0 %v266
    %417 = vmatpush.xpose.msra.mxu0 %v244
    %418 = vmatmul.f32.gmra.mxu0 %v297
    %v419 = vpop.f32.mrf.mxu0
    %v420 = vadd.f32 %v400, %v419
    %421 = vdwg.mxu0
    %422 = vmatpush.xpose.msra.mxu0 0.0
    %423 = vmatpush.xpose.msra.mxu0 0.0
    %424 = vmatpush.xpose.msra.mxu0 0.0
    %425 = vmatpush.xpose.msra.mxu0 0.0
    %426 = vmatpush.xpose.msra.mxu0 0.0
    %427 = vmatpush.xpose.msra.mxu0 0.0
    %428 = vmatpush.xpose.msra.mxu0 0.0
    %429 = vmatpush.xpose.msra.mxu0 0.0
    %430 = vmatpush.xpose.msra.mxu0 0.0
    %431 = vmatpush.xpose.msra.mxu0 0.0
    %432 = vmatpush.xpose.msra.mxu0 0.0
    %433 = vmatpush.xpose.msra.mxu0 0.0
    %434 = vmatpush.xpose.msra.mxu0 0.0
    %435 = vmatpush.xpose.msra.mxu0 0.0
    %436 = vmatpush.xpose.msra.mxu0 %v267
    %437 = vmatpush.xpose.msra.mxu0 %v245
    %438 = vmatmul.f32.gmra.mxu0 %v298
    %v439 = vpop.f32.mrf.mxu0
    %v440 = vadd.f32 %v420, %v439
    %441 = vdwg.mxu0
    %442 = vmatpush.xpose.msra.mxu0 0.0
    %443 = vmatpush.xpose.msra.mxu0 0.0
    %444 = vmatpush.xpose.msra.mxu0 0.0
    %445 = vmatpush.xpose.msra.mxu0 0.0
    %446 = vmatpush.xpose.msra.mxu0 0.0
    %447 = vmatpush.xpose.msra.mxu0 0.0
    %448 = vmatpush.xpose.msra.mxu0 0.0
    %449 = vmatpush.xpose.msra.mxu0 0.0
    %450 = vmatpush.xpose.msra.mxu0 0.0
    %451 = vmatpush.xpose.msra.mxu0 0.0
    %452 = vmatpush.xpose.msra.mxu0 0.0
    %453 = vmatpush.xpose.msra.mxu0 0.0
    %454 = vmatpush.xpose.msra.mxu0 0.0
    %455 = vmatpush.xpose.msra.mxu0 0.0
    %456 = vmatpush.xpose.msra.mxu0 %v268
    %457 = vmatpush.xpose.msra.mxu0 %v246
    %458 = vmatmul.f32.gmra.mxu0 %v299
    %v459 = vpop.f32.mrf.mxu0
    %v460 = vadd.f32 %v440, %v459
    %461 = vdwg.mxu0
    %462 = vmatpush.xpose.msra.mxu0 0.0
    %463 = vmatpush.xpose.msra.mxu0 0.0
    %464 = vmatpush.xpose.msra.mxu0 0.0
    %465 = vmatpush.xpose.msra.mxu0 0.0
    %466 = vmatpush.xpose.msra.mxu0 0.0
    %467 = vmatpush.xpose.msra.mxu0 0.0
    %468 = vmatpush.xpose.msra.mxu0 0.0
    %469 = vmatpush.xpose.msra.mxu0 0.0
    %470 = vmatpush.xpose.msra.mxu0 0.0
    %471 = vmatpush.xpose.msra.mxu0 0.0
    %472 = vmatpush.xpose.msra.mxu0 0.0
    %473 = vmatpush.xpose.msra.mxu0 0.0
    %474 = vmatpush.xpose.msra.mxu0 0.0
    %475 = vmatpush.xpose.msra.mxu0 0.0
    %476 = vmatpush.xpose.msra.mxu0 %v269
    %477 = vmatpush.xpose.msra.mxu0 %v247
    %478 = vmatmul.f32.gmra.mxu0 %v300
    %v479 = vpop.f32.mrf.mxu0
    %v480 = vadd.f32 %v460, %v479
    %481 = vdwg.mxu0
    %482 = vmatpush.xpose.msra.mxu0 0.0
    %483 = vmatpush.xpose.msra.mxu0 0.0
    %484 = vmatpush.xpose.msra.mxu0 0.0
    %485 = vmatpush.xpose.msra.mxu0 0.0
    %486 = vmatpush.xpose.msra.mxu0 0.0
    %487 = vmatpush.xpose.msra.mxu0 0.0
    %488 = vmatpush.xpose.msra.mxu0 0.0
    %489 = vmatpush.xpose.msra.mxu0 0.0
    %490 = vmatpush.xpose.msra.mxu0 0.0
    %491 = vmatpush.xpose.msra.mxu0 0.0
    %492 = vmatpush.xpose.msra.mxu0 0.0
    %493 = vmatpush.xpose.msra.mxu0 0.0
    %494 = vmatpush.xpose.msra.mxu0 0.0
    %495 = vmatpush.xpose.msra.mxu0 0.0
    %496 = vmatpush.xpose.msra.mxu0 %v270
    %497 = vmatpush.xpose.msra.mxu0 %v248
    %498 = vmatmul.f32.gmra.mxu0 %v301
    %v499 = vpop.f32.mrf.mxu0
    %v500 = vadd.f32 %v480, %v499
    %501 = vdwg.mxu0
    %502 = vmatpush.xpose.msra.mxu0 0.0
    %503 = vmatpush.xpose.msra.mxu0 0.0
    %504 = vmatpush.xpose.msra.mxu0 0.0
    %505 = vmatpush.xpose.msra.mxu0 0.0
    %506 = vmatpush.xpose.msra.mxu0 0.0
    %507 = vmatpush.xpose.msra.mxu0 0.0
    %508 = vmatpush.xpose.msra.mxu0 0.0
    %509 = vmatpush.xpose.msra.mxu0 0.0
    %510 = vmatpush.xpose.msra.mxu0 0.0
    %511 = vmatpush.xpose.msra.mxu0 0.0
    %512 = vmatpush.xpose.msra.mxu0 0.0
    %513 = vmatpush.xpose.msra.mxu0 0.0
    %514 = vmatpush.xpose.msra.mxu0 0.0
    %515 = vmatpush.xpose.msra.mxu0 0.0
    %516 = vmatpush.xpose.msra.mxu0 %v271
    %517 = vmatpush.xpose.msra.mxu0 %v249
    %518 = vmatmul.f32.gmra.mxu0 %v304
    %v519 = vpop.f32.mrf.mxu0
    %v520 = vadd.f32 %v500, %v519
    %521 = vdwg.mxu0
    %522 = vmatpush.xpose.msra.mxu0 0.0
    %523 = vmatpush.xpose.msra.mxu0 0.0
    %524 = vmatpush.xpose.msra.mxu0 0.0
    %525 = vmatpush.xpose.msra.mxu0 0.0
    %526 = vmatpush.xpose.msra.mxu0 0.0
    %527 = vmatpush.xpose.msra.mxu0 0.0
    %528 = vmatpush.xpose.msra.mxu0 0.0
    %529 = vmatpush.xpose.msra.mxu0 0.0
    %530 = vmatpush.xpose.msra.mxu0 0.0
    %531 = vmatpush.xpose.msra.mxu0 0.0
    %532 = vmatpush.xpose.msra.mxu0 0.0
    %533 = vmatpush.xpose.msra.mxu0 0.0
    %534 = vmatpush.xpose.msra.mxu0 0.0
    %535 = vmatpush.xpose.msra.mxu0 0.0
    %536 = vmatpush.xpose.msra.mxu0 %v272
    %537 = vmatpush.xpose.msra.mxu0 %v250
    %538 = vmatmul.f32.gmra.mxu0 %v305
    %v539 = vpop.f32.mrf.mxu0
    %v540 = vadd.f32 %v520, %v539
    %541 = vdwg.mxu0
    %542 = vmatpush.xpose.msra.mxu0 0.0
    %543 = vmatpush.xpose.msra.mxu0 0.0
    %544 = vmatpush.xpose.msra.mxu0 0.0
    %545 = vmatpush.xpose.msra.mxu0 0.0
    %546 = vmatpush.xpose.msra.mxu0 0.0
    %547 = vmatpush.xpose.msra.mxu0 0.0
    %548 = vmatpush.xpose.msra.mxu0 0.0
    %549 = vmatpush.xpose.msra.mxu0 0.0
    %550 = vmatpush.xpose.msra.mxu0 0.0
    %551 = vmatpush.xpose.msra.mxu0 0.0
    %552 = vmatpush.xpose.msra.mxu0 0.0
    %553 = vmatpush.xpose.msra.mxu0 0.0
    %554 = vmatpush.xpose.msra.mxu0 0.0
    %555 = vmatpush.xpose.msra.mxu0 0.0
    %556 = vmatpush.xpose.msra.mxu0 %v273
    %557 = vmatpush.xpose.msra.mxu0 %v251
    %558 = vmatmul.f32.gmra.mxu0 %v306
    %v559 = vpop.f32.mrf.mxu0
    %v560 = vadd.f32 %v540, %v559
    %561 = vdwg.mxu0
    %562 = vmatpush.xpose.msra.mxu0 0.0
    %563 = vmatpush.xpose.msra.mxu0 0.0
    %564 = vmatpush.xpose.msra.mxu0 0.0
    %565 = vmatpush.xpose.msra.mxu0 0.0
    %566 = vmatpush.xpose.msra.mxu0 0.0
    %567 = vmatpush.xpose.msra.mxu0 0.0
    %568 = vmatpush.xpose.msra.mxu0 0.0
    %569 = vmatpush.xpose.msra.mxu0 0.0
    %570 = vmatpush.xpose.msra.mxu0 0.0
    %571 = vmatpush.xpose.msra.mxu0 0.0
    %572 = vmatpush.xpose.msra.mxu0 0.0
    %573 = vmatpush.xpose.msra.mxu0 0.0
    %574 = vmatpush.xpose.msra.mxu0 0.0
    %575 = vmatpush.xpose.msra.mxu0 0.0
    %576 = vmatpush.xpose.msra.mxu0 %v274
    %577 = vmatpush.xpose.msra.mxu0 %v252
    %578 = vmatmul.f32.gmra.mxu0 %v307
    %v579 = vpop.f32.mrf.mxu0
    %v580 = vadd.f32 %v560, %v579
    %581 = vdwg.mxu0
    %582 = vmatpush.xpose.msra.mxu0 0.0
    %583 = vmatpush.xpose.msra.mxu0 0.0
    %584 = vmatpush.xpose.msra.mxu0 0.0
    %585 = vmatpush.xpose.msra.mxu0 0.0
    %586 = vmatpush.xpose.msra.mxu0 0.0
    %587 = vmatpush.xpose.msra.mxu0 0.0
    %588 = vmatpush.xpose.msra.mxu0 0.0
    %589 = vmatpush.xpose.msra.mxu0 0.0
    %590 = vmatpush.xpose.msra.mxu0 0.0
    %591 = vmatpush.xpose.msra.mxu0 0.0
    %592 = vmatpush.xpose.msra.mxu0 0.0
    %593 = vmatpush.xpose.msra.mxu0 0.0
    %594 = vmatpush.xpose.msra.mxu0 0.0
    %595 = vmatpush.xpose.msra.mxu0 0.0
    %596 = vmatpush.xpose.msra.mxu0 %v275
    %597 = vmatpush.xpose.msra.mxu0 %v253
    %598 = vmatmul.f32.gmra.mxu0 %v308
    %v599 = vpop.f32.mrf.mxu0
    %v600 = vadd.f32 %v580, %v599
    %601 = vdwg.mxu0
    %602 = vmatpush.xpose.msra.mxu0 0.0
    %603 = vmatpush.xpose.msra.mxu0 0.0
    %604 = vmatpush.xpose.msra.mxu0 0.0
    %605 = vmatpush.xpose.msra.mxu0 0.0
    %606 = vmatpush.xpose.msra.mxu0 0.0
    %607 = vmatpush.xpose.msra.mxu0 0.0
    %608 = vmatpush.xpose.msra.mxu0 0.0
    %609 = vmatpush.xpose.msra.mxu0 0.0
    %610 = vmatpush.xpose.msra.mxu0 0.0
    %611 = vmatpush.xpose.msra.mxu0 0.0
    %612 = vmatpush.xpose.msra.mxu0 0.0
    %613 = vmatpush.xpose.msra.mxu0 0.0
    %614 = vmatpush.xpose.msra.mxu0 0.0
    %615 = vmatpush.xpose.msra.mxu0 0.0
    %616 = vmatpush.xpose.msra.mxu0 %v276
    %617 = vmatpush.xpose.msra.mxu0 %v254
    %618 = vmatmul.f32.gmra.mxu0 %v309
    %v619 = vpop.f32.mrf.mxu0
    %v620 = vadd.f32 %v600, %v619
    %621 = vdwg.mxu0
    %622 = vmatpush.xpose.msra.mxu0 0.0
    %623 = vmatpush.xpose.msra.mxu0 0.0
    %624 = vmatpush.xpose.msra.mxu0 0.0
    %625 = vmatpush.xpose.msra.mxu0 0.0
    %626 = vmatpush.xpose.msra.mxu0 0.0
    %627 = vmatpush.xpose.msra.mxu0 0.0
    %628 = vmatpush.xpose.msra.mxu0 0.0
    %629 = vmatpush.xpose.msra.mxu0 0.0
    %630 = vmatpush.xpose.msra.mxu0 0.0
    %631 = vmatpush.xpose.msra.mxu0 0.0
    %632 = vmatpush.xpose.msra.mxu0 0.0
    %633 = vmatpush.xpose.msra.mxu0 0.0
    %634 = vmatpush.xpose.msra.mxu0 0.0
    %635 = vmatpush.xpose.msra.mxu0 0.0
    %636 = vmatpush.xpose.msra.mxu0 %v277
    %637 = vmatpush.xpose.msra.mxu0 %v255
    %638 = vmatmul.f32.gmra.mxu0 %v310
    %v639 = vpop.f32.mrf.mxu0
    %v640 = vadd.f32 %v620, %v639
    %641 = vdwg.mxu0
    %642 = vmatpush.xpose.msra.mxu0 0.0
    %643 = vmatpush.xpose.msra.mxu0 0.0
    %644 = vmatpush.xpose.msra.mxu0 0.0
    %645 = vmatpush.xpose.msra.mxu0 0.0
    %646 = vmatpush.xpose.msra.mxu0 0.0
    %647 = vmatpush.xpose.msra.mxu0 0.0
    %648 = vmatpush.xpose.msra.mxu0 0.0
    %649 = vmatpush.xpose.msra.mxu0 0.0
    %650 = vmatpush.xpose.msra.mxu0 0.0
    %651 = vmatpush.xpose.msra.mxu0 0.0
    %652 = vmatpush.xpose.msra.mxu0 0.0
    %653 = vmatpush.xpose.msra.mxu0 0.0
    %654 = vmatpush.xpose.msra.mxu0 0.0
    %655 = vmatpush.xpose.msra.mxu0 0.0
    %656 = vmatpush.xpose.msra.mxu0 %v278
    %657 = vmatpush.xpose.msra.mxu0 %v256
    %658 = vmatmul.f32.gmra.mxu0 %v311
    %v659 = vpop.f32.mrf.mxu0
    %v660 = vadd.f32 %v640, %v659
    %661 = vdwg.mxu0
    %662 = vmatpush.xpose.msra.mxu0 0.0
    %663 = vmatpush.xpose.msra.mxu0 0.0
    %664 = vmatpush.xpose.msra.mxu0 0.0
    %665 = vmatpush.xpose.msra.mxu0 0.0
    %666 = vmatpush.xpose.msra.mxu0 0.0
    %667 = vmatpush.xpose.msra.mxu0 0.0
    %668 = vmatpush.xpose.msra.mxu0 0.0
    %669 = vmatpush.xpose.msra.mxu0 0.0
    %670 = vmatpush.xpose.msra.mxu0 0.0
    %671 = vmatpush.xpose.msra.mxu0 0.0
    %672 = vmatpush.xpose.msra.mxu0 0.0
    %673 = vmatpush.xpose.msra.mxu0 0.0
    %674 = vmatpush.xpose.msra.mxu0 0.0
    %675 = vmatpush.xpose.msra.mxu0 0.0
    %676 = vmatpush.xpose.msra.mxu0 %v279
    %677 = vmatpush.xpose.msra.mxu0 %v257
    %678 = vmatmul.f32.gmra.mxu0 %v314
    %v679 = vpop.f32.mrf.mxu0
    %v680 = vadd.f32 %v660, %v679
    %681 = vdwg.mxu0
    %682 = vmatpush.xpose.msra.mxu0 0.0
    %683 = vmatpush.xpose.msra.mxu0 0.0
    %684 = vmatpush.xpose.msra.mxu0 0.0
    %685 = vmatpush.xpose.msra.mxu0 0.0
    %686 = vmatpush.xpose.msra.mxu0 0.0
    %687 = vmatpush.xpose.msra.mxu0 0.0
    %688 = vmatpush.xpose.msra.mxu0 0.0
    %689 = vmatpush.xpose.msra.mxu0 0.0
    %690 = vmatpush.xpose.msra.mxu0 0.0
    %691 = vmatpush.xpose.msra.mxu0 0.0
    %692 = vmatpush.xpose.msra.mxu0 0.0
    %693 = vmatpush.xpose.msra.mxu0 0.0
    %694 = vmatpush.xpose.msra.mxu0 0.0
    %695 = vmatpush.xpose.msra.mxu0 0.0
    %696 = vmatpush.xpose.msra.mxu0 %v280
    %697 = vmatpush.xpose.msra.mxu0 %v258
    %698 = vmatmul.f32.gmra.mxu0 %v315
    %v699 = vpop.f32.mrf.mxu0
    %v700 = vadd.f32 %v680, %v699
    %701 = vdwg.mxu0
    %702 = vmatpush.xpose.msra.mxu0 0.0
    %703 = vmatpush.xpose.msra.mxu0 0.0
    %704 = vmatpush.xpose.msra.mxu0 0.0
    %705 = vmatpush.xpose.msra.mxu0 0.0
    %706 = vmatpush.xpose.msra.mxu0 0.0
    %707 = vmatpush.xpose.msra.mxu0 0.0
    %708 = vmatpush.xpose.msra.mxu0 0.0
    %709 = vmatpush.xpose.msra.mxu0 0.0
    %710 = vmatpush.xpose.msra.mxu0 0.0
    %711 = vmatpush.xpose.msra.mxu0 0.0
    %712 = vmatpush.xpose.msra.mxu0 0.0
    %713 = vmatpush.xpose.msra.mxu0 0.0
    %714 = vmatpush.xpose.msra.mxu0 0.0
    %715 = vmatpush.xpose.msra.mxu0 0.0
    %716 = vmatpush.xpose.msra.mxu0 %v281
    %717 = vmatpush.xpose.msra.mxu0 %v259
    %718 = vmatmul.f32.gmra.mxu0 %v316
    %v719 = vpop.f32.mrf.mxu0
    %v720 = vadd.f32 %v700, %v719
    %721 = vdwg.mxu0
    %722 = vmatpush.xpose.msra.mxu0 0.0
    %723 = vmatpush.xpose.msra.mxu0 0.0
    %724 = vmatpush.xpose.msra.mxu0 0.0
    %725 = vmatpush.xpose.msra.mxu0 0.0
    %726 = vmatpush.xpose.msra.mxu0 0.0
    %727 = vmatpush.xpose.msra.mxu0 0.0
    %728 = vmatpush.xpose.msra.mxu0 0.0
    %729 = vmatpush.xpose.msra.mxu0 0.0
    %730 = vmatpush.xpose.msra.mxu0 0.0
    %731 = vmatpush.xpose.msra.mxu0 0.0
    %732 = vmatpush.xpose.msra.mxu0 0.0
    %733 = vmatpush.xpose.msra.mxu0 0.0
    %734 = vmatpush.xpose.msra.mxu0 0.0
    %735 = vmatpush.xpose.msra.mxu0 0.0
    %736 = vmatpush.xpose.msra.mxu0 %v282
    %737 = vmatpush.xpose.msra.mxu0 %v260
    %738 = vmatmul.f32.gmra.mxu0 %v317
    %v739 = vpop.f32.mrf.mxu0
    %v740 = vadd.f32 %v720, %v739
    %741 = vdwg.mxu0
    %742 = vmatpush.xpose.msra.mxu0 0.0
    %743 = vmatpush.xpose.msra.mxu0 0.0
    %744 = vmatpush.xpose.msra.mxu0 0.0
    %745 = vmatpush.xpose.msra.mxu0 0.0
    %746 = vmatpush.xpose.msra.mxu0 0.0
    %747 = vmatpush.xpose.msra.mxu0 0.0
    %748 = vmatpush.xpose.msra.mxu0 0.0
    %749 = vmatpush.xpose.msra.mxu0 0.0
    %750 = vmatpush.xpose.msra.mxu0 0.0
    %751 = vmatpush.xpose.msra.mxu0 0.0
    %752 = vmatpush.xpose.msra.mxu0 0.0
    %753 = vmatpush.xpose.msra.mxu0 0.0
    %754 = vmatpush.xpose.msra.mxu0 0.0
    %755 = vmatpush.xpose.msra.mxu0 0.0
    %756 = vmatpush.xpose.msra.mxu0 %v283
    %757 = vmatpush.xpose.msra.mxu0 %v261
    %758 = vmatmul.f32.gmra.mxu0 %v318
    %v759 = vpop.f32.mrf.mxu0
    %v760 = vadd.f32 %v740, %v759
    %761 = vdwg.mxu0
    %762 = vmatpush.xpose.msra.mxu0 0.0
    %763 = vmatpush.xpose.msra.mxu0 0.0
    %764 = vmatpush.xpose.msra.mxu0 0.0
    %765 = vmatpush.xpose.msra.mxu0 0.0
    %766 = vmatpush.xpose.msra.mxu0 0.0
    %767 = vmatpush.xpose.msra.mxu0 0.0
    %768 = vmatpush.xpose.msra.mxu0 0.0
    %769 = vmatpush.xpose.msra.mxu0 0.0
    %770 = vmatpush.xpose.msra.mxu0 0.0
    %771 = vmatpush.xpose.msra.mxu0 0.0
    %772 = vmatpush.xpose.msra.mxu0 0.0
    %773 = vmatpush.xpose.msra.mxu0 0.0
    %774 = vmatpush.xpose.msra.mxu0 0.0
    %775 = vmatpush.xpose.msra.mxu0 0.0
    %776 = vmatpush.xpose.msra.mxu0 %v284
    %777 = vmatpush.xpose.msra.mxu0 %v262
    %778 = vmatmul.f32.gmra.mxu0 %v319
    %v779 = vpop.f32.mrf.mxu0
    %v780 = vadd.f32 %v760, %v779
    %781 = vdwg.mxu0
    %783 = vst [vmem:[#allocation1] ss:$4 sm:$0xff] %v228
    %v784 = vld.sshfl [vmem:[#allocation1] sm:$0xff pattern:$0x73625140]
    %v785 = vld.sshfl [vmem:[#allocation1 + $0x8] sm:$0xff pattern:$0x73625140]
    %v786 = vld.sshfl [vmem:[#allocation1 + $0x10] sm:$0xff pattern:$0x73625140]
    %vm789 = vcmask 629760
    %v790 = vsel %vm789, %v786, 0
    %v793 = vsel %vm789, %v231, 0
    %v796 = vsel %vm789, %v234, 0
    %798 = vmatpush.xpose.msra.mxu0 0.0
    %799 = vmatpush.xpose.msra.mxu0 0.0
    %800 = vmatpush.xpose.msra.mxu0 0.0
    %801 = vmatpush.xpose.msra.mxu0 0.0
    %802 = vmatpush.xpose.msra.mxu0 0.0
    %803 = vmatpush.xpose.msra.mxu0 0.0
    %804 = vmatpush.xpose.msra.mxu0 0.0
    %805 = vmatpush.xpose.msra.mxu0 0.0
    %806 = vmatpush.xpose.msra.mxu0 0.0
    %807 = vmatpush.xpose.msra.mxu0 0.0
    %808 = vmatpush.xpose.msra.mxu0 0.0
    %809 = vmatpush.xpose.msra.mxu0 0.0
    %810 = vmatpush.xpose.msra.mxu0 0.0
    %811 = vmatpush.xpose.msra.mxu0 0.0
    %812 = vmatpush.xpose.msra.mxu0 %v232
    %813 = vmatpush.xpose.msra.mxu0 %v229
    %814 = vmatmul.f32.gmra.mxu0 %v784
    %v815 = vpop.f32.mrf.mxu0
    %v816 = vadd.f32 %v780, %v815
    %817 = vdwg.mxu0
    %818 = vmatpush.xpose.msra.mxu0 0.0
    %819 = vmatpush.xpose.msra.mxu0 0.0
    %820 = vmatpush.xpose.msra.mxu0 0.0
    %821 = vmatpush.xpose.msra.mxu0 0.0
    %822 = vmatpush.xpose.msra.mxu0 0.0
    %823 = vmatpush.xpose.msra.mxu0 0.0
    %824 = vmatpush.xpose.msra.mxu0 0.0
    %825 = vmatpush.xpose.msra.mxu0 0.0
    %826 = vmatpush.xpose.msra.mxu0 0.0
    %827 = vmatpush.xpose.msra.mxu0 0.0
    %828 = vmatpush.xpose.msra.mxu0 0.0
    %829 = vmatpush.xpose.msra.mxu0 0.0
    %830 = vmatpush.xpose.msra.mxu0 0.0
    %831 = vmatpush.xpose.msra.mxu0 0.0
    %832 = vmatpush.xpose.msra.mxu0 %v233
    %833 = vmatpush.xpose.msra.mxu0 %v230
    %834 = vmatmul.f32.gmra.mxu0 %v785
    %v835 = vpop.f32.mrf.mxu0
    %v836 = vadd.f32 %v816, %v835
    %837 = vdwg.mxu0
    %838 = vmatpush.xpose.msra.mxu0 0.0
    %839 = vmatpush.xpose.msra.mxu0 0.0
    %840 = vmatpush.xpose.msra.mxu0 0.0
    %841 = vmatpush.xpose.msra.mxu0 0.0
    %842 = vmatpush.xpose.msra.mxu0 0.0
    %843 = vmatpush.xpose.msra.mxu0 0.0
    %844 = vmatpush.xpose.msra.mxu0 0.0
    %845 = vmatpush.xpose.msra.mxu0 0.0
    %846 = vmatpush.xpose.msra.mxu0 0.0
    %847 = vmatpush.xpose.msra.mxu0 0.0
    %848 = vmatpush.xpose.msra.mxu0 0.0
    %849 = vmatpush.xpose.msra.mxu0 0.0
    %850 = vmatpush.xpose.msra.mxu0 0.0
    %851 = vmatpush.xpose.msra.mxu0 0.0
    %852 = vmatpush.xpose.msra.mxu0 %v796
    %853 = vmatpush.xpose.msra.mxu0 %v793
    %854 = vmatmul.f32.gmra.mxu0 %v790
    %v855 = vpop.f32.mrf.mxu0
    %v856 = vadd.f32 %v836, %v855
    %857 = vdwg.mxu0
    %v858 = vmax.f32 %v856, 0.0
    %v859 = vld [vmem:[#allocation8] sm:$0xff]
    %v860 = vld [vmem:[#allocation8 + $0x8] sm:$0xff]
    %vm861 = vcmask 130048
    %v863 = vsel %vm861, %v858, 0
    %865 = vmatpush.msra.mxu0 0.0
    %866 = vmatpush.msra.mxu0 0.0
    %867 = vmatpush.msra.mxu0 0.0
    %868 = vmatpush.msra.mxu0 0.0
    %869 = vmatpush.msra.mxu0 0.0
    %870 = vmatpush.msra.mxu0 0.0
    %871 = vmatpush.msra.mxu0 0.0
    %872 = vmatpush.msra.mxu0 0.0
    %873 = vmatpush.msra.mxu0 0.0
    %874 = vmatpush.msra.mxu0 0.0
    %875 = vmatpush.msra.mxu0 0.0
    %876 = vmatpush.msra.mxu0 0.0
    %877 = vmatpush.msra.mxu0 0.0
    %878 = vmatpush.msra.mxu0 0.0
    %879 = vmatpush.msra.mxu0 %v860
    %880 = vmatpush.msra.mxu0 %v859
    %881 = vmatmul.f32.gmra.mxu0 %v863
    %v882 = vpop.f32.mrf.mxu0
    %v883 = vadd.f32 0.0, %v882
    %884 = vdwg.mxu0
    %v885 = vmax.f32 %v883, 0.0
    %v886 = vld [vmem:[#allocation9] sm:$0xff]
    %v887 = vld [vmem:[#allocation9 + $0x8] sm:$0xff]
    %v889 = vsel %vm861, %v885, 0
    %891 = vmatpush.msra.mxu0 0.0
    %892 = vmatpush.msra.mxu0 0.0
    %893 = vmatpush.msra.mxu0 0.0
    %894 = vmatpush.msra.mxu0 0.0
    %895 = vmatpush.msra.mxu0 0.0
    %896 = vmatpush.msra.mxu0 0.0
    %897 = vmatpush.msra.mxu0 0.0
    %898 = vmatpush.msra.mxu0 0.0
    %899 = vmatpush.msra.mxu0 0.0
    %900 = vmatpush.msra.mxu0 0.0
    %901 = vmatpush.msra.mxu0 0.0
    %902 = vmatpush.msra.mxu0 0.0
    %903 = vmatpush.msra.mxu0 0.0
    %904 = vmatpush.msra.mxu0 0.0
    %905 = vmatpush.msra.mxu0 %v887
    %906 = vmatpush.msra.mxu0 %v886
    %907 = vmatmul.f32.gmra.mxu0 %v889
    %v908 = vpop.f32.mrf.mxu0
    %v909 = vadd.f32 0.0, %v908
    %910 = vdwg.mxu0
    %911 = vst [vmem:[#allocation11] sm:$0x3] %v909
    // Predicated region
    $region42: #{network_forward.1} parent=1 // pred_check
      _
    $region43: #{network_forward.1} parent=1 // pred_check_branch
      %913 = sbr.rel (0) target = $region45
    $region44: #{network_forward.1} parent=1 // pred_region
      %915 = vsyncadd [#allocation5], 0
      %s917 = sshll.u32 [#allocation11], 4
      %s918 = int_to_ptr.vmem [resolvable:$true] %s917
      %s919 = sshll.u32 %s6, 4
      %s920 = int_to_ptr.hbm [resolvable:$true] %s919
      %922 = dma.vmem_to_hbm [thread:$0]  %s918, 32, %s920, [#allocation5]
    $region45: #{network_forward.1} parent=1 // pred_fallthru
      _
    // Predicated region
    $region46: #{network_forward.1} parent=1 // pred_check
      _
    $region47: #{network_forward.1} parent=1 // pred_check_branch
      %924 = sbr.rel (0) target = $region49
    $region48: #{network_forward.1} parent=1 // pred_region
      %926 = dma.done [#allocation5], 32
    $region49: #{network_forward.1} parent=1 // pred_fallthru
      _
    %927 = vsyncpa [#allocation4], 1
    %928 = vsyncpa [#allocation7], 1
    %929 = vsyncpa [#allocation10], 1
    %930 = vsyncpa [#allocation5], 1

</llo_original>
